<compile_context>
chip_gen: v6e
topology: v6e:2x2x1
jax: 0.10.0
libtpu: 0.0.40
codegen_flags: <defaults>
</compile_context>

<pallas_src>
import functools

import jax
import jax.numpy as jnp
from jax import lax
from jax.experimental import pallas as pl
from jax.experimental.pallas import tpu as pltpu


# -----------------------------------------------------------------------------
# helpers
# -----------------------------------------------------------------------------
def _round_up(x, m):
    return ((x + m - 1) // m) * m


def _largest_divisor(n, cap):
    cap = max(1, min(n, cap))
    for d in range(cap, 0, -1):
        if n % d == 0:
            return d
    return 1


def _pick_time_block_for_output(t, cap):
    # This block size is the second-to-last dim of the logits output block, so
    # it must be a multiple of 8 or equal to the full T extent.
    if t <= cap:
        return t
    for d in range(cap, 7, -1):
        if t % d == 0 and d % 8 == 0:
            return d
    return t


def _pick_vocab_block(vp, cap):
    # vp is a multiple of 128 here; pick the largest multiple-of-128 divisor of
    # vp that is <= cap so every logits store is lane-dense.
    best = 128
    d = 128
    while d <= min(vp, cap):
        if vp % d == 0:
            best = d
        d += 128
    return best


# -----------------------------------------------------------------------------
# Kernel 1: LSTM recurrence only (input projection hoisted, LayerNorm hoisted).
# State is carried in the h/c output refs (constant block index along the time
# axis => VMEM-resident accumulator).  Raw hiddens written time-major (T, B, H).
# -----------------------------------------------------------------------------
def _lstm_kernel(xproj_ref,    # (t_blk, Bb, 4H)  precomputed x @ W_ih^T + bias
                 whh_ref,      # (H, 4H)          W_hh^T
                 h0_ref,       # (Bb, H)          initial hidden
                 c0_ref,       # (Bb, H)          initial cell
                 h_seq_ref,    # (t_blk, Bb, H)   raw hiddens (output)
                 hout_ref,     # (Bb, H)          final hidden (state carrier)
                 cout_ref,     # (Bb, H)          final cell   (state carrier)
                 *, t_blk, hidden_dim):
    tb = pl.program_id(1)      # time-block index (axis 0 is the batch split)

    @pl.when(tb == 0)
    def _():
        hout_ref[...] = h0_ref[...]
        cout_ref[...] = c0_ref[...]

    whh = whh_ref[...]
    H = hidden_dim

    def step(s, carry):
        h_prev, c_prev = carry
        # Only the recurrent matmul is on the serial path; x-part + bias were
        # precomputed outside the loop as one big GEMM.
        gates = xproj_ref[s] + jnp.dot(h_prev.astype(whh.dtype), whh,
                                       preferred_element_type=jnp.float32)

        # PyTorch LSTM gate order: input, forget, cell(g), output.
        # TODO(synk): for production shapes pad H to a multiple of 128 so these
        # slices are aligned lane-group views and stores are unmasked.
        i_g = jax.nn.sigmoid(gates[:, 0 * H:1 * H])
        f_g = jax.nn.sigmoid(gates[:, 1 * H:2 * H])
        g_g = jnp.tanh(gates[:, 2 * H:3 * H])
        o_g = jax.nn.sigmoid(gates[:, 3 * H:4 * H])

        c_new = f_g * c_prev + i_g * g_g
        h_new = o_g * jnp.tanh(c_new)
        h_seq_ref[s] = h_new.astype(h_seq_ref.dtype)
        return h_new, c_new

    h_fin, c_fin = lax.fori_loop(0, t_blk, step,
                                 (hout_ref[...], cout_ref[...]),
                                 unroll=True)
    hout_ref[...] = h_fin
    cout_ref[...] = c_fin


# -----------------------------------------------------------------------------
# Kernel 2: LayerNorm + vocab projection.
#   LN + the (T,B)->(B,T) relayout happen ONCE per time tile (vi == 0) into a
#   VMEM scratch; each vocab tile then does a pure GEMM and a lane-dense
#   batch-first store.
# -----------------------------------------------------------------------------
def _ln_proj_kernel(x_ref,     # (tt, B, H)   raw hiddens, time-major
                    lnw_ref,   # (1, H)       LayerNorm weight
                    lnb_ref,   # (1, H)       LayerNorm bias
                    w_ref,     # (H, tv)      fc weight tile
                    b_ref,     # (1, tv)      fc bias tile
                    o_ref,     # (B, tt, tv)  logits (batch-first)
                    xb_ref):   # scratch (B*tt, H) normalized, batch-first-flat
    vi = pl.program_id(1)

    @pl.when(vi == 0)
    def _():
        x = x_ref[...].astype(jnp.float32)                    # (tt, B, H)
        mean = jnp.mean(x, axis=-1, keepdims=True)
        var = jnp.mean((x - mean) ** 2, axis=-1, keepdims=True)
        y = (x - mean) * lax.rsqrt(var + 1e-5) * lnw_ref[...] + lnb_ref[...]
        tt, b, h = x.shape
        xb_ref[...] = (jnp.transpose(y, (1, 0, 2))
                       .reshape(b * tt, h)
                       .astype(xb_ref.dtype))

    y = (jnp.dot(xb_ref[...], w_ref[...],
                 preferred_element_type=jnp.float32)
         + b_ref[...])                                        # (B*tt, tv)
    b_dim, tt_dim, tv_dim = o_ref.shape
    o_ref[...] = y.reshape(b_dim, tt_dim, tv_dim).astype(o_ref.dtype)


# -----------------------------------------------------------------------------
# Wrapper
# -----------------------------------------------------------------------------
def decoder_pallas(tokens, hidden, cell, params, *,
                   matmul_dtype=jnp.float32, batch_split=1):
    """tokens: (B, T) int32, hidden/cell: (1, B, H).
    Returns (prediction (B, T, V), hidden (1, B, H), cell (1, B, H)).

    matmul_dtype=jnp.bfloat16 is recommended on v6e/v7x (MXU operands only;
    accumulation and elementwise/LN math stay f32).  batch_split=2 lets v7x run
    the recurrence on both TensorCores (keep 1 on v5e/v6e)."""
    emb_table = params["embedding"]            # (V, E)
    w_ih = params["w_ih"]                      # (4H, E)
    w_hh = params["w_hh"]                      # (4H, H)
    b_ih = params["b_ih"]                      # (4H,)
    b_hh = params["b_hh"]                      # (4H,)
    ln_w = params["ln_w"]                      # (H,)
    ln_b = params["ln_b"]                      # (H,)
    fc_w = params["fc_w"]                      # (V, H)
    fc_b = params["fc_b"]                      # (V,)

    B, T = tokens.shape
    V, E = emb_table.shape
    H = w_hh.shape[1]
    assert B % batch_split == 0
    Bb = B // batch_split

    # ---- glue (plain JAX): embedding gather + hoisted input projection -------
    # One large-M GEMM at full MXU utilization; the recurrent kernel then only
    # does the small h_prev @ W_hh^T per step (no per-step concat / broadcast).
    # TODO(synk): fuse the gather into a Pallas GEMM via scalar-prefetched token
    # ids if materializing the (T, B, 4H) intermediate ever matters.
    emb_tbf = jnp.take(emb_table, tokens.T, axis=0).astype(jnp.float32)  # (T,B,E)
    bias = (b_ih + b_hh).astype(jnp.float32)                             # (4H,)
    xproj = (jnp.dot(emb_tbf.reshape(T * B, E).astype(matmul_dtype),
                     w_ih.T.astype(matmul_dtype),
                     preferred_element_type=jnp.float32)
             .reshape(T, B, 4 * H) + bias)                               # (T,B,4H)

    whh_t = w_hh.T.astype(matmul_dtype)                                  # (H,4H)
    h0 = hidden[0].astype(jnp.float32)
    c0 = cell[0].astype(jnp.float32)

    # ---------------- Kernel 1: recurrence ------------------------------------
    # TODO(synk): for prime/odd T this collapses to t_blk=1; pad T (with masked
    # tail steps) for production shapes.
    t_blk = _largest_divisor(T, 32)
    h_store_dtype = matmul_dtype               # consumed as a matmul input below
    kern1 = functools.partial(_lstm_kernel, t_blk=t_blk, hidden_dim=H)

    h_seq, h_last, c_last = pl.pallas_call(
        kern1,
        out_shape=(
            jax.ShapeDtypeStruct((T, B, H), h_store_dtype),  # raw hiddens
            jax.ShapeDtypeStruct((B, H), jnp.float32),       # final hidden
            jax.ShapeDtypeStruct((B, H), jnp.float32),       # final cell
        ),
        grid_spec=pltpu.PrefetchScalarGridSpec(
            num_scalar_prefetch=0,
            grid=(batch_split, T // t_blk),
            in_specs=[
                pl.BlockSpec((t_blk, Bb, 4 * H), lambda b, t: (t, b, 0)),
                # TODO(synk): single-buffer these grid-invariant inputs
                # (pipeline_mode=pl.Buffered(1)) to halve their VMEM footprint
                # on v7x once that knob is verified on the target jax version.
                pl.BlockSpec((H, 4 * H), lambda b, t: (0, 0)),
                pl.BlockSpec((Bb, H), lambda b, t: (b, 0)),
                pl.BlockSpec((Bb, H), lambda b, t: (b, 0)),
            ],
            out_specs=[
                pl.BlockSpec((t_blk, Bb, H), lambda b, t: (t, b, 0)),
                pl.BlockSpec((Bb, H), lambda b, t: (b, 0)),
                pl.BlockSpec((Bb, H), lambda b, t: (b, 0)),
            ],
        ),
        compiler_params=pltpu.CompilerParams(
            dimension_semantics=("parallel", "arbitrary"),   # batch x sequential
            vmem_limit_bytes=48 * 1024 * 1024),
    )(xproj, whh_t, h0, c0)

    # ---------------- Kernel 2: LayerNorm + vocab projection ------------------
    lnw = ln_w.reshape(1, H).astype(jnp.float32)
    lnb = ln_b.reshape(1, H).astype(jnp.float32)

    if V % 128 == 0:
        Vp = V
        tv = _pick_vocab_block(Vp, 256)        # v7x(64 MiB VMEM)-safe tile cap
        fcw_t = fc_w.T.astype(matmul_dtype)
        fcb_r = fc_b.reshape(1, V).astype(jnp.float32)
    elif V <= 2048:
        # Small / unaligned vocab: single full-width tile -> no pad, no slice.
        Vp = V
        tv = V
        fcw_t = fc_w.T.astype(matmul_dtype)
        fcb_r = fc_b.reshape(1, V).astype(jnp.float32)
    else:
        # Large unaligned vocab: pad to lane-dense tiles.
        # TODO(synk): mask-store the tail tile instead to avoid the post-hoc
        # [:, :, :V] slice (a second HBM copy of the logits).
        Vp = _round_up(V, 128)
        tv = _pick_vocab_block(Vp, 256)
        fcw_t = jnp.pad(fc_w.T, ((0, 0), (0, Vp - V))).astype(matmul_dtype)
        fcb_r = jnp.pad(fc_b.reshape(1, V),
                        ((0, 0), (0, Vp - V))).astype(jnp.float32)

    tt_p = _pick_time_block_for_output(T, 64)  # v7x-safe time tile cap

    logits = pl.pallas_call(
        _ln_proj_kernel,
        out_shape=jax.ShapeDtypeStruct((B, T, Vp), jnp.float32),
        grid_spec=pltpu.PrefetchScalarGridSpec(
            num_scalar_prefetch=0,
            grid=(T // tt_p, Vp // tv),
            in_specs=[
                pl.BlockSpec((tt_p, B, H), lambda ti, vi: (ti, 0, 0)),
                pl.BlockSpec((1, H), lambda ti, vi: (0, 0)),
                pl.BlockSpec((1, H), lambda ti, vi: (0, 0)),
                pl.BlockSpec((H, tv), lambda ti, vi: (0, vi)),
                pl.BlockSpec((1, tv), lambda ti, vi: (0, vi)),
            ],
            out_specs=pl.BlockSpec((B, tt_p, tv), lambda ti, vi: (0, ti, vi)),
            scratch_shapes=[pltpu.VMEM((B * tt_p, H), matmul_dtype)],
        ),
        compiler_params=pltpu.CompilerParams(
            # Time axis parallel (megacore); vocab axis arbitrary so the
            # per-time-tile LN scratch is always initialized at vi == 0.
            dimension_semantics=("parallel", "arbitrary"),
            vmem_limit_bytes=48 * 1024 * 1024),
    )(h_seq, lnw, lnb, fcw_t, fcb_r)

    prediction = logits if Vp == V else logits[:, :, :V]
    return prediction, h_last[None], c_last[None]


# -----------------------------------------------------------------------------
# Pure-JAX reference (mirrors PyTorch semantics) for correctness check.
# -----------------------------------------------------------------------------
def decoder_ref(tokens, hidden, cell, params):
    emb = jnp.take(params["embedding"], tokens, axis=0)    # (B, T, E)
    H = params["w_hh"].shape[1]
    w_ih_t = params["w_ih"].T
    w_hh_t = params["w_hh"].T
    b = params["b_ih"] + params["b_hh"]

    def step(carry, x_t):
        h, c = carry
        gates = x_t @ w_ih_t + h @ w_hh_t + b
        i = jax.nn.sigmoid(gates[:, 0 * H:1 * H])
        f = jax.nn.sigmoid(gates[:, 1 * H:2 * H])
        g = jnp.tanh(gates[:, 2 * H:3 * H])
        o = jax.nn.sigmoid(gates[:, 3 * H:4 * H])
        c_new = f * c + i * g
        h_new = o * jnp.tanh(c_new)
        return (h_new, c_new), h_new

    (h_f, c_f), hs = lax.scan(step, (hidden[0], cell[0]),
                              jnp.transpose(emb, (1, 0, 2)))
    outputs = jnp.transpose(hs, (1, 0, 2))                 # (B, T, H)
    mean = jnp.mean(outputs, axis=-1, keepdims=True)
    var = jnp.mean((outputs - mean) ** 2, axis=-1, keepdims=True)
    normed = (outputs - mean) * lax.rsqrt(var + 1e-5) * params["ln_w"] + params["ln_b"]
    pred = normed @ params["fc_w"].T + params["fc_b"]
    return pred, h_f[None], c_f[None]


if __name__ == "__main__":
    # Small, module-consistent shapes.
    vocab_size, embedding_dim, hidden_dim = 64, 16, 32
    B, T = 2, 8

    key = jax.random.PRNGKey(0)
    keys = jax.random.split(key, 12)

    emb_table = 0.1 * jax.random.normal(keys[0], (vocab_size, embedding_dim), jnp.float32)
    emb_table = emb_table.at[0].set(0.0)   # padding_idx=0

    params = {
        "embedding": emb_table,
        "w_ih": 0.1 * jax.random.normal(keys[1], (4 * hidden_dim, embedding_dim), jnp.float32),
        "w_hh": 0.1 * jax.random.normal(keys[2], (4 * hidden_dim, hidden_dim), jnp.float32),
        "b_ih": 0.05 * jax.random.normal(keys[3], (4 * hidden_dim,), jnp.float32),
        "b_hh": 0.05 * jax.random.normal(keys[4], (4 * hidden_dim,), jnp.float32),
        "ln_w": jnp.ones((hidden_dim,), jnp.float32)
                + 0.01 * jax.random.normal(keys[5], (hidden_dim,), jnp.float32),
        "ln_b": 0.01 * jax.random.normal(keys[6], (hidden_dim,), jnp.float32),
        "fc_w": 0.1 * jax.random.normal(keys[7], (vocab_size, hidden_dim), jnp.float32),
        "fc_b": 0.05 * jax.random.normal(keys[8], (vocab_size,), jnp.float32),
    }

    tokens = jax.random.randint(keys[9], (B, T), 0, vocab_size, dtype=jnp.int32)
    hidden0 = 0.1 * jax.random.normal(keys[10], (1, B, hidden_dim), jnp.float32)
    cell0 = 0.1 * jax.random.normal(keys[11], (1, B, hidden_dim), jnp.float32)

    pred, h_out, c_out = jax.block_until_ready(
        decoder_pallas(tokens, hidden0, cell0, params))

    pred_r, h_r, c_r = decoder_ref(tokens, hidden0, cell0, params)

    assert pred.shape == (B, T, vocab_size)
    assert h_out.shape == (1, B, hidden_dim) and c_out.shape == (1, B, hidden_dim)
    assert jnp.allclose(pred, pred_r, atol=1e-4, rtol=1e-4)
    assert jnp.allclose(h_out, h_r, atol=1e-4, rtol=1e-4)
    assert jnp.allclose(c_out, c_r, atol=1e-4, rtol=1e-4)

    print("KERNEL_OK")
</pallas_src>

<mosaic_0001>
module attributes {stable_mosaic.version = 11 : i64} {
  func.func @_lstm_kernel(%arg0: i32, %arg1: i32, %arg2: memref<8x2x128xf32, #tpu.memory_space<vmem>>, %arg3: memref<32x128xf32, #tpu.memory_space<vmem>>, %arg4: memref<2x32xf32, #tpu.memory_space<vmem>>, %arg5: memref<2x32xf32, #tpu.memory_space<vmem>>, %arg6: memref<8x2x32xf32, #tpu.memory_space<vmem>>, %arg7: memref<2x32xf32, #tpu.memory_space<vmem>>, %arg8: memref<2x32xf32, #tpu.memory_space<vmem>>) attributes {dimension_semantics = [#tpu.dimension_semantics<parallel>, #tpu.dimension_semantics<arbitrary>], iteration_bounds = array<i64: 1, 1>, scalar_prefetch = 0 : i64, scratch_operands = 0 : i64, tpu.core_type = #tpu.core_type<tc>, window_params = [{transform_indices = @transform_0, window_bounds = array<i64: 8, 2, 128>}, {pipeline_mode = #tpu.pipeline_mode<synchronous>, transform_indices = @transform_1, window_bounds = array<i64: 32, 128>}, {transform_indices = @transform_2, window_bounds = array<i64: 2, 32>}, {transform_indices = @transform_3, window_bounds = array<i64: 2, 32>}, {transform_indices = @transform_4, window_bounds = array<i64: 8, 2, 32>}, {transform_indices = @transform_5, window_bounds = array<i64: 2, 32>}, {transform_indices = @transform_6, window_bounds = array<i64: 2, 32>}]} {
    %c0_i32 = arith.constant 0 : i32
    %0 = arith.cmpi eq, %arg1, %c0_i32 : i32
    %1 = arith.extui %0 : i1 to i32
    %c0_i32_0 = arith.constant 0 : i32
    %2 = arith.cmpi ne, %1, %c0_i32_0 : i32
    scf.if %2 {
      %c0_74 = arith.constant 0 : index
      %c0_75 = arith.constant 0 : index
      %280 = vector.load %arg4[%c0_74, %c0_75] : memref<2x32xf32, #tpu.memory_space<vmem>>, vector<2x32xf32>
      %c0_76 = arith.constant 0 : index
      %c0_77 = arith.constant 0 : index
      %281 = vector.load %arg7[%c0_76, %c0_77] : memref<2x32xf32, #tpu.memory_space<vmem>>, vector<2x32xf32>
      tpu.vector_store %arg7[%c0_76, %c0_77], %280 {strides = array<i32>} : memref<2x32xf32, #tpu.memory_space<vmem>>, vector<2x32xf32>,
      %c0_78 = arith.constant 0 : index
      %c0_79 = arith.constant 0 : index
      %282 = vector.load %arg5[%c0_78, %c0_79] : memref<2x32xf32, #tpu.memory_space<vmem>>, vector<2x32xf32>
      %c0_80 = arith.constant 0 : index
      %c0_81 = arith.constant 0 : index
      %283 = vector.load %arg8[%c0_80, %c0_81] : memref<2x32xf32, #tpu.memory_space<vmem>>, vector<2x32xf32>
      tpu.vector_store %arg8[%c0_80, %c0_81], %282 {strides = array<i32>} : memref<2x32xf32, #tpu.memory_space<vmem>>, vector<2x32xf32>,
    } else {
    }
    %c0 = arith.constant 0 : index
    %c0_1 = arith.constant 0 : index
    %3 = vector.load %arg3[%c0, %c0_1] : memref<32x128xf32, #tpu.memory_space<vmem>>, vector<32x128xf32>
    %c0_2 = arith.constant 0 : index
    %c0_3 = arith.constant 0 : index
    %4 = vector.load %arg7[%c0_2, %c0_3] : memref<2x32xf32, #tpu.memory_space<vmem>>, vector<2x32xf32>
    %c0_4 = arith.constant 0 : index
    %c0_5 = arith.constant 0 : index
    %5 = vector.load %arg8[%c0_4, %c0_5] : memref<2x32xf32, #tpu.memory_space<vmem>>, vector<2x32xf32>
    %c0_i32_6 = arith.constant 0 : i32
    %6 = arith.index_cast %c0_i32_6 : i32 to index
    %c0_7 = arith.constant 0 : index
    %c0_8 = arith.constant 0 : index
    %7 = vector.load %arg2[%6, %c0_7, %c0_8] : memref<8x2x128xf32, #tpu.memory_space<vmem>>, vector<1x2x128xf32>
    %8 = vector.shape_cast %7 : vector<1x2x128xf32> to vector<2x128xf32>
    %cst = arith.constant dense<0.000000e+00> : vector<2x128xf32>
    %9 = tpu.matmul %4, %3, %cst {dimension_numbers = #tpu.dot_dimension_numbers<[1], [0], [0], [1], [0, 0, 1, 1], [], []>} : vector<2x32xf32>, vector<32x128xf32>, vector<2x128xf32> -> vector<2x128xf32>
    %10 = arith.addf %8, %9 : vector<2x128xf32>
    %11 = vector.extract_strided_slice %10 {offsets = [0, 0], sizes = [2, 32], strides = [1, 1]} : vector<2x128xf32> to vector<2x32xf32>
    %12 = arith.negf %11 : vector<2x32xf32>
    %13 = math.exp %12 : vector<2x32xf32>
    %cst_9 = arith.constant 1.000000e+00 : f32
    %14 = vector.broadcast %cst_9 : f32 to vector<2x32xf32>
    %15 = arith.addf %14, %13 : vector<2x32xf32>
    %16 = arith.divf %14, %15 : vector<2x32xf32>
    %17 = vector.extract_strided_slice %10 {offsets = [0, 32], sizes = [2, 32], strides = [1, 1]} : vector<2x128xf32> to vector<2x32xf32>
    %18 = arith.negf %17 : vector<2x32xf32>
    %19 = math.exp %18 : vector<2x32xf32>
    %cst_10 = arith.constant 1.000000e+00 : f32
    %20 = vector.broadcast %cst_10 : f32 to vector<2x32xf32>
    %21 = arith.addf %20, %19 : vector<2x32xf32>
    %22 = arith.divf %20, %21 : vector<2x32xf32>
    %23 = vector.extract_strided_slice %10 {offsets = [0, 64], sizes = [2, 32], strides = [1, 1]} : vector<2x128xf32> to vector<2x32xf32>
    %24 = math.tanh %23 : vector<2x32xf32>
    %25 = vector.extract_strided_slice %10 {offsets = [0, 96], sizes = [2, 32], strides = [1, 1]} : vector<2x128xf32> to vector<2x32xf32>
    %26 = arith.negf %25 : vector<2x32xf32>
    %27 = math.exp %26 : vector<2x32xf32>
    %cst_11 = arith.constant 1.000000e+00 : f32
    %28 = vector.broadcast %cst_11 : f32 to vector<2x32xf32>
    %29 = arith.addf %28, %27 : vector<2x32xf32>
    %30 = arith.divf %28, %29 : vector<2x32xf32>
    %31 = arith.mulf %22, %5 : vector<2x32xf32>
    %32 = arith.mulf %16, %24 : vector<2x32xf32>
    %33 = arith.addf %31, %32 : vector<2x32xf32>
    %34 = math.tanh %33 : vector<2x32xf32>
    %35 = arith.mulf %30, %34 : vector<2x32xf32>
    %36 = arith.index_cast %c0_i32_6 : i32 to index
    %c0_12 = arith.constant 0 : index
    %c0_13 = arith.constant 0 : index
    %37 = vector.load %arg6[%36, %c0_12, %c0_13] : memref<8x2x32xf32, #tpu.memory_space<vmem>>, vector<1x2x32xf32>
    %38 = vector.shape_cast %37 : vector<1x2x32xf32> to vector<2x32xf32>
    %39 = vector.shape_cast %35 : vector<2x32xf32> to vector<1x2x32xf32>
    tpu.vector_store %arg6[%36, %c0_12, %c0_13], %39 {strides = array<i32>} : memref<8x2x32xf32, #tpu.memory_space<vmem>>, vector<1x2x32xf32>,
    %c1_i32 = arith.constant 1 : i32
    %40 = arith.index_cast %c1_i32 : i32 to index
    %c0_14 = arith.constant 0 : index
    %c0_15 = arith.constant 0 : index
    %41 = vector.load %arg2[%40, %c0_14, %c0_15] : memref<8x2x128xf32, #tpu.memory_space<vmem>>, vector<1x2x128xf32>
    %42 = vector.shape_cast %41 : vector<1x2x128xf32> to vector<2x128xf32>
    %cst_16 = arith.constant dense<0.000000e+00> : vector<2x128xf32>
    %43 = tpu.matmul %35, %3, %cst_16 {dimension_numbers = #tpu.dot_dimension_numbers<[1], [0], [0], [1], [0, 0, 1, 1], [], []>} : vector<2x32xf32>, vector<32x128xf32>, vector<2x128xf32> -> vector<2x128xf32>
    %44 = arith.addf %42, %43 : vector<2x128xf32>
    %45 = vector.extract_strided_slice %44 {offsets = [0, 0], sizes = [2, 32], strides = [1, 1]} : vector<2x128xf32> to vector<2x32xf32>
    %46 = arith.negf %45 : vector<2x32xf32>
    %47 = math.exp %46 : vector<2x32xf32>
    %cst_17 = arith.constant 1.000000e+00 : f32
    %48 = vector.broadcast %cst_17 : f32 to vector<2x32xf32>
    %49 = arith.addf %48, %47 : vector<2x32xf32>
    %50 = arith.divf %48, %49 : vector<2x32xf32>
    %51 = vector.extract_strided_slice %44 {offsets = [0, 32], sizes = [2, 32], strides = [1, 1]} : vector<2x128xf32> to vector<2x32xf32>
    %52 = arith.negf %51 : vector<2x32xf32>
    %53 = math.exp %52 : vector<2x32xf32>
    %cst_18 = arith.constant 1.000000e+00 : f32
    %54 = vector.broadcast %cst_18 : f32 to vector<2x32xf32>
    %55 = arith.addf %54, %53 : vector<2x32xf32>
    %56 = arith.divf %54, %55 : vector<2x32xf32>
    %57 = vector.extract_strided_slice %44 {offsets = [0, 64], sizes = [2, 32], strides = [1, 1]} : vector<2x128xf32> to vector<2x32xf32>
    %58 = math.tanh %57 : vector<2x32xf32>
    %59 = vector.extract_strided_slice %44 {offsets = [0, 96], sizes = [2, 32], strides = [1, 1]} : vector<2x128xf32> to vector<2x32xf32>
    %60 = arith.negf %59 : vector<2x32xf32>
    %61 = math.exp %60 : vector<2x32xf32>
    %cst_19 = arith.constant 1.000000e+00 : f32
    %62 = vector.broadcast %cst_19 : f32 to vector<2x32xf32>
    %63 = arith.addf %62, %61 : vector<2x32xf32>
    %64 = arith.divf %62, %63 : vector<2x32xf32>
    %65 = arith.mulf %56, %33 : vector<2x32xf32>
    %66 = arith.mulf %50, %58 : vector<2x32xf32>
    %67 = arith.addf %65, %66 : vector<2x32xf32>
    %68 = math.tanh %67 : vector<2x32xf32>
    %69 = arith.mulf %64, %68 : vector<2x32xf32>
    %70 = arith.index_cast %c1_i32 : i32 to index
    %c0_20 = arith.constant 0 : index
    %c0_21 = arith.constant 0 : index
    %71 = vector.load %arg6[%70, %c0_20, %c0_21] : memref<8x2x32xf32, #tpu.memory_space<vmem>>, vector<1x2x32xf32>
    %72 = vector.shape_cast %71 : vector<1x2x32xf32> to vector<2x32xf32>
    %73 = vector.shape_cast %69 : vector<2x32xf32> to vector<1x2x32xf32>
    tpu.vector_store %arg6[%70, %c0_20, %c0_21], %73 {strides = array<i32>} : memref<8x2x32xf32, #tpu.memory_space<vmem>>, vector<1x2x32xf32>,
    %c2_i32 = arith.constant 2 : i32
    %74 = arith.index_cast %c2_i32 : i32 to index
    %c0_22 = arith.constant 0 : index
    %c0_23 = arith.constant 0 : index
    %75 = vector.load %arg2[%74, %c0_22, %c0_23] : memref<8x2x128xf32, #tpu.memory_space<vmem>>, vector<1x2x128xf32>
    %76 = vector.shape_cast %75 : vector<1x2x128xf32> to vector<2x128xf32>
    %cst_24 = arith.constant dense<0.000000e+00> : vector<2x128xf32>
    %77 = tpu.matmul %69, %3, %cst_24 {dimension_numbers = #tpu.dot_dimension_numbers<[1], [0], [0], [1], [0, 0, 1, 1], [], []>} : vector<2x32xf32>, vector<32x128xf32>, vector<2x128xf32> -> vector<2x128xf32>
    %78 = arith.addf %76, %77 : vector<2x128xf32>
    %79 = vector.extract_strided_slice %78 {offsets = [0, 0], sizes = [2, 32], strides = [1, 1]} : vector<2x128xf32> to vector<2x32xf32>
    %80 = arith.negf %79 : vector<2x32xf32>
    %81 = math.exp %80 : vector<2x32xf32>
    %cst_25 = arith.constant 1.000000e+00 : f32
    %82 = vector.broadcast %cst_25 : f32 to vector<2x32xf32>
    %83 = arith.addf %82, %81 : vector<2x32xf32>
    %84 = arith.divf %82, %83 : vector<2x32xf32>
    %85 = vector.extract_strided_slice %78 {offsets = [0, 32], sizes = [2, 32], strides = [1, 1]} : vector<2x128xf32> to vector<2x32xf32>
    %86 = arith.negf %85 : vector<2x32xf32>
    %87 = math.exp %86 : vector<2x32xf32>
    %cst_26 = arith.constant 1.000000e+00 : f32
    %88 = vector.broadcast %cst_26 : f32 to vector<2x32xf32>
    %89 = arith.addf %88, %87 : vector<2x32xf32>
    %90 = arith.divf %88, %89 : vector<2x32xf32>
    %91 = vector.extract_strided_slice %78 {offsets = [0, 64], sizes = [2, 32], strides = [1, 1]} : vector<2x128xf32> to vector<2x32xf32>
    %92 = math.tanh %91 : vector<2x32xf32>
    %93 = vector.extract_strided_slice %78 {offsets = [0, 96], sizes = [2, 32], strides = [1, 1]} : vector<2x128xf32> to vector<2x32xf32>
    %94 = arith.negf %93 : vector<2x32xf32>
    %95 = math.exp %94 : vector<2x32xf32>
    %cst_27 = arith.constant 1.000000e+00 : f32
    %96 = vector.broadcast %cst_27 : f32 to vector<2x32xf32>
    %97 = arith.addf %96, %95 : vector<2x32xf32>
    %98 = arith.divf %96, %97 : vector<2x32xf32>
    %99 = arith.mulf %90, %67 : vector<2x32xf32>
    %100 = arith.mulf %84, %92 : vector<2x32xf32>
    %101 = arith.addf %99, %100 : vector<2x32xf32>
    %102 = math.tanh %101 : vector<2x32xf32>
    %103 = arith.mulf %98, %102 : vector<2x32xf32>
    %104 = arith.index_cast %c2_i32 : i32 to index
    %c0_28 = arith.constant 0 : index
    %c0_29 = arith.constant 0 : index
    %105 = vector.load %arg6[%104, %c0_28, %c0_29] : memref<8x2x32xf32, #tpu.memory_space<vmem>>, vector<1x2x32xf32>
    %106 = vector.shape_cast %105 : vector<1x2x32xf32> to vector<2x32xf32>
    %107 = vector.shape_cast %103 : vector<2x32xf32> to vector<1x2x32xf32>
    tpu.vector_store %arg6[%104, %c0_28, %c0_29], %107 {strides = array<i32>} : memref<8x2x32xf32, #tpu.memory_space<vmem>>, vector<1x2x32xf32>,
    %c3_i32 = arith.constant 3 : i32
    %108 = arith.index_cast %c3_i32 : i32 to index
    %c0_30 = arith.constant 0 : index
    %c0_31 = arith.constant 0 : index
    %109 = vector.load %arg2[%108, %c0_30, %c0_31] : memref<8x2x128xf32, #tpu.memory_space<vmem>>, vector<1x2x128xf32>
    %110 = vector.shape_cast %109 : vector<1x2x128xf32> to vector<2x128xf32>
    %cst_32 = arith.constant dense<0.000000e+00> : vector<2x128xf32>
    %111 = tpu.matmul %103, %3, %cst_32 {dimension_numbers = #tpu.dot_dimension_numbers<[1], [0], [0], [1], [0, 0, 1, 1], [], []>} : vector<2x32xf32>, vector<32x128xf32>, vector<2x128xf32> -> vector<2x128xf32>
    %112 = arith.addf %110, %111 : vector<2x128xf32>
    %113 = vector.extract_strided_slice %112 {offsets = [0, 0], sizes = [2, 32], strides = [1, 1]} : vector<2x128xf32> to vector<2x32xf32>
    %114 = arith.negf %113 : vector<2x32xf32>
    %115 = math.exp %114 : vector<2x32xf32>
    %cst_33 = arith.constant 1.000000e+00 : f32
    %116 = vector.broadcast %cst_33 : f32 to vector<2x32xf32>
    %117 = arith.addf %116, %115 : vector<2x32xf32>
    %118 = arith.divf %116, %117 : vector<2x32xf32>
    %119 = vector.extract_strided_slice %112 {offsets = [0, 32], sizes = [2, 32], strides = [1, 1]} : vector<2x128xf32> to vector<2x32xf32>
    %120 = arith.negf %119 : vector<2x32xf32>
    %121 = math.exp %120 : vector<2x32xf32>
    %cst_34 = arith.constant 1.000000e+00 : f32
    %122 = vector.broadcast %cst_34 : f32 to vector<2x32xf32>
    %123 = arith.addf %122, %121 : vector<2x32xf32>
    %124 = arith.divf %122, %123 : vector<2x32xf32>
    %125 = vector.extract_strided_slice %112 {offsets = [0, 64], sizes = [2, 32], strides = [1, 1]} : vector<2x128xf32> to vector<2x32xf32>
    %126 = math.tanh %125 : vector<2x32xf32>
    %127 = vector.extract_strided_slice %112 {offsets = [0, 96], sizes = [2, 32], strides = [1, 1]} : vector<2x128xf32> to vector<2x32xf32>
    %128 = arith.negf %127 : vector<2x32xf32>
    %129 = math.exp %128 : vector<2x32xf32>
    %cst_35 = arith.constant 1.000000e+00 : f32
    %130 = vector.broadcast %cst_35 : f32 to vector<2x32xf32>
    %131 = arith.addf %130, %129 : vector<2x32xf32>
    %132 = arith.divf %130, %131 : vector<2x32xf32>
    %133 = arith.mulf %124, %101 : vector<2x32xf32>
    %134 = arith.mulf %118, %126 : vector<2x32xf32>
    %135 = arith.addf %133, %134 : vector<2x32xf32>
    %136 = math.tanh %135 : vector<2x32xf32>
    %137 = arith.mulf %132, %136 : vector<2x32xf32>
    %138 = arith.index_cast %c3_i32 : i32 to index
    %c0_36 = arith.constant 0 : index
    %c0_37 = arith.constant 0 : index
    %139 = vector.load %arg6[%138, %c0_36, %c0_37] : memref<8x2x32xf32, #tpu.memory_space<vmem>>, vector<1x2x32xf32>
    %140 = vector.shape_cast %139 : vector<1x2x32xf32> to vector<2x32xf32>
    %141 = vector.shape_cast %137 : vector<2x32xf32> to vector<1x2x32xf32>
    tpu.vector_store %arg6[%138, %c0_36, %c0_37], %141 {strides = array<i32>} : memref<8x2x32xf32, #tpu.memory_space<vmem>>, vector<1x2x32xf32>,
    %c4_i32 = arith.constant 4 : i32
    %142 = arith.index_cast %c4_i32 : i32 to index
    %c0_38 = arith.constant 0 : index
    %c0_39 = arith.constant 0 : index
    %143 = vector.load %arg2[%142, %c0_38, %c0_39] : memref<8x2x128xf32, #tpu.memory_space<vmem>>, vector<1x2x128xf32>
    %144 = vector.shape_cast %143 : vector<1x2x128xf32> to vector<2x128xf32>
    %cst_40 = arith.constant dense<0.000000e+00> : vector<2x128xf32>
    %145 = tpu.matmul %137, %3, %cst_40 {dimension_numbers = #tpu.dot_dimension_numbers<[1], [0], [0], [1], [0, 0, 1, 1], [], []>} : vector<2x32xf32>, vector<32x128xf32>, vector<2x128xf32> -> vector<2x128xf32>
    %146 = arith.addf %144, %145 : vector<2x128xf32>
    %147 = vector.extract_strided_slice %146 {offsets = [0, 0], sizes = [2, 32], strides = [1, 1]} : vector<2x128xf32> to vector<2x32xf32>
    %148 = arith.negf %147 : vector<2x32xf32>
    %149 = math.exp %148 : vector<2x32xf32>
    %cst_41 = arith.constant 1.000000e+00 : f32
    %150 = vector.broadcast %cst_41 : f32 to vector<2x32xf32>
    %151 = arith.addf %150, %149 : vector<2x32xf32>
    %152 = arith.divf %150, %151 : vector<2x32xf32>
    %153 = vector.extract_strided_slice %146 {offsets = [0, 32], sizes = [2, 32], strides = [1, 1]} : vector<2x128xf32> to vector<2x32xf32>
    %154 = arith.negf %153 : vector<2x32xf32>
    %155 = math.exp %154 : vector<2x32xf32>
    %cst_42 = arith.constant 1.000000e+00 : f32
    %156 = vector.broadcast %cst_42 : f32 to vector<2x32xf32>
    %157 = arith.addf %156, %155 : vector<2x32xf32>
    %158 = arith.divf %156, %157 : vector<2x32xf32>
    %159 = vector.extract_strided_slice %146 {offsets = [0, 64], sizes = [2, 32], strides = [1, 1]} : vector<2x128xf32> to vector<2x32xf32>
    %160 = math.tanh %159 : vector<2x32xf32>
    %161 = vector.extract_strided_slice %146 {offsets = [0, 96], sizes = [2, 32], strides = [1, 1]} : vector<2x128xf32> to vector<2x32xf32>
    %162 = arith.negf %161 : vector<2x32xf32>
    %163 = math.exp %162 : vector<2x32xf32>
    %cst_43 = arith.constant 1.000000e+00 : f32
    %164 = vector.broadcast %cst_43 : f32 to vector<2x32xf32>
    %165 = arith.addf %164, %163 : vector<2x32xf32>
    %166 = arith.divf %164, %165 : vector<2x32xf32>
    %167 = arith.mulf %158, %135 : vector<2x32xf32>
    %168 = arith.mulf %152, %160 : vector<2x32xf32>
    %169 = arith.addf %167, %168 : vector<2x32xf32>
    %170 = math.tanh %169 : vector<2x32xf32>
    %171 = arith.mulf %166, %170 : vector<2x32xf32>
    %172 = arith.index_cast %c4_i32 : i32 to index
    %c0_44 = arith.constant 0 : index
    %c0_45 = arith.constant 0 : index
    %173 = vector.load %arg6[%172, %c0_44, %c0_45] : memref<8x2x32xf32, #tpu.memory_space<vmem>>, vector<1x2x32xf32>
    %174 = vector.shape_cast %173 : vector<1x2x32xf32> to vector<2x32xf32>
    %175 = vector.shape_cast %171 : vector<2x32xf32> to vector<1x2x32xf32>
    tpu.vector_store %arg6[%172, %c0_44, %c0_45], %175 {strides = array<i32>} : memref<8x2x32xf32, #tpu.memory_space<vmem>>, vector<1x2x32xf32>,
    %c5_i32 = arith.constant 5 : i32
    %176 = arith.index_cast %c5_i32 : i32 to index
    %c0_46 = arith.constant 0 : index
    %c0_47 = arith.constant 0 : index
    %177 = vector.load %arg2[%176, %c0_46, %c0_47] : memref<8x2x128xf32, #tpu.memory_space<vmem>>, vector<1x2x128xf32>
    %178 = vector.shape_cast %177 : vector<1x2x128xf32> to vector<2x128xf32>
    %cst_48 = arith.constant dense<0.000000e+00> : vector<2x128xf32>
    %179 = tpu.matmul %171, %3, %cst_48 {dimension_numbers = #tpu.dot_dimension_numbers<[1], [0], [0], [1], [0, 0, 1, 1], [], []>} : vector<2x32xf32>, vector<32x128xf32>, vector<2x128xf32> -> vector<2x128xf32>
    %180 = arith.addf %178, %179 : vector<2x128xf32>
    %181 = vector.extract_strided_slice %180 {offsets = [0, 0], sizes = [2, 32], strides = [1, 1]} : vector<2x128xf32> to vector<2x32xf32>
    %182 = arith.negf %181 : vector<2x32xf32>
    %183 = math.exp %182 : vector<2x32xf32>
    %cst_49 = arith.constant 1.000000e+00 : f32
    %184 = vector.broadcast %cst_49 : f32 to vector<2x32xf32>
    %185 = arith.addf %184, %183 : vector<2x32xf32>
    %186 = arith.divf %184, %185 : vector<2x32xf32>
    %187 = vector.extract_strided_slice %180 {offsets = [0, 32], sizes = [2, 32], strides = [1, 1]} : vector<2x128xf32> to vector<2x32xf32>
    %188 = arith.negf %187 : vector<2x32xf32>
    %189 = math.exp %188 : vector<2x32xf32>
    %cst_50 = arith.constant 1.000000e+00 : f32
    %190 = vector.broadcast %cst_50 : f32 to vector<2x32xf32>
    %191 = arith.addf %190, %189 : vector<2x32xf32>
    %192 = arith.divf %190, %191 : vector<2x32xf32>
    %193 = vector.extract_strided_slice %180 {offsets = [0, 64], sizes = [2, 32], strides = [1, 1]} : vector<2x128xf32> to vector<2x32xf32>
    %194 = math.tanh %193 : vector<2x32xf32>
    %195 = vector.extract_strided_slice %180 {offsets = [0, 96], sizes = [2, 32], strides = [1, 1]} : vector<2x128xf32> to vector<2x32xf32>
    %196 = arith.negf %195 : vector<2x32xf32>
    %197 = math.exp %196 : vector<2x32xf32>
    %cst_51 = arith.constant 1.000000e+00 : f32
    %198 = vector.broadcast %cst_51 : f32 to vector<2x32xf32>
    %199 = arith.addf %198, %197 : vector<2x32xf32>
    %200 = arith.divf %198, %199 : vector<2x32xf32>
    %201 = arith.mulf %192, %169 : vector<2x32xf32>
    %202 = arith.mulf %186, %194 : vector<2x32xf32>
    %203 = arith.addf %201, %202 : vector<2x32xf32>
    %204 = math.tanh %203 : vector<2x32xf32>
    %205 = arith.mulf %200, %204 : vector<2x32xf32>
    %206 = arith.index_cast %c5_i32 : i32 to index
    %c0_52 = arith.constant 0 : index
    %c0_53 = arith.constant 0 : index
    %207 = vector.load %arg6[%206, %c0_52, %c0_53] : memref<8x2x32xf32, #tpu.memory_space<vmem>>, vector<1x2x32xf32>
    %208 = vector.shape_cast %207 : vector<1x2x32xf32> to vector<2x32xf32>
    %209 = vector.shape_cast %205 : vector<2x32xf32> to vector<1x2x32xf32>
    tpu.vector_store %arg6[%206, %c0_52, %c0_53], %209 {strides = array<i32>} : memref<8x2x32xf32, #tpu.memory_space<vmem>>, vector<1x2x32xf32>,
    %c6_i32 = arith.constant 6 : i32
    %210 = arith.index_cast %c6_i32 : i32 to index
    %c0_54 = arith.constant 0 : index
    %c0_55 = arith.constant 0 : index
    %211 = vector.load %arg2[%210, %c0_54, %c0_55] : memref<8x2x128xf32, #tpu.memory_space<vmem>>, vector<1x2x128xf32>
    %212 = vector.shape_cast %211 : vector<1x2x128xf32> to vector<2x128xf32>
    %cst_56 = arith.constant dense<0.000000e+00> : vector<2x128xf32>
    %213 = tpu.matmul %205, %3, %cst_56 {dimension_numbers = #tpu.dot_dimension_numbers<[1], [0], [0], [1], [0, 0, 1, 1], [], []>} : vector<2x32xf32>, vector<32x128xf32>, vector<2x128xf32> -> vector<2x128xf32>
    %214 = arith.addf %212, %213 : vector<2x128xf32>
    %215 = vector.extract_strided_slice %214 {offsets = [0, 0], sizes = [2, 32], strides = [1, 1]} : vector<2x128xf32> to vector<2x32xf32>
    %216 = arith.negf %215 : vector<2x32xf32>
    %217 = math.exp %216 : vector<2x32xf32>
    %cst_57 = arith.constant 1.000000e+00 : f32
    %218 = vector.broadcast %cst_57 : f32 to vector<2x32xf32>
    %219 = arith.addf %218, %217 : vector<2x32xf32>
    %220 = arith.divf %218, %219 : vector<2x32xf32>
    %221 = vector.extract_strided_slice %214 {offsets = [0, 32], sizes = [2, 32], strides = [1, 1]} : vector<2x128xf32> to vector<2x32xf32>
    %222 = arith.negf %221 : vector<2x32xf32>
    %223 = math.exp %222 : vector<2x32xf32>
    %cst_58 = arith.constant 1.000000e+00 : f32
    %224 = vector.broadcast %cst_58 : f32 to vector<2x32xf32>
    %225 = arith.addf %224, %223 : vector<2x32xf32>
    %226 = arith.divf %224, %225 : vector<2x32xf32>
    %227 = vector.extract_strided_slice %214 {offsets = [0, 64], sizes = [2, 32], strides = [1, 1]} : vector<2x128xf32> to vector<2x32xf32>
    %228 = math.tanh %227 : vector<2x32xf32>
    %229 = vector.extract_strided_slice %214 {offsets = [0, 96], sizes = [2, 32], strides = [1, 1]} : vector<2x128xf32> to vector<2x32xf32>
    %230 = arith.negf %229 : vector<2x32xf32>
    %231 = math.exp %230 : vector<2x32xf32>
    %cst_59 = arith.constant 1.000000e+00 : f32
    %232 = vector.broadcast %cst_59 : f32 to vector<2x32xf32>
    %233 = arith.addf %232, %231 : vector<2x32xf32>
    %234 = arith.divf %232, %233 : vector<2x32xf32>
    %235 = arith.mulf %226, %203 : vector<2x32xf32>
    %236 = arith.mulf %220, %228 : vector<2x32xf32>
    %237 = arith.addf %235, %236 : vector<2x32xf32>
    %238 = math.tanh %237 : vector<2x32xf32>
    %239 = arith.mulf %234, %238 : vector<2x32xf32>
    %240 = arith.index_cast %c6_i32 : i32 to index
    %c0_60 = arith.constant 0 : index
    %c0_61 = arith.constant 0 : index
    %241 = vector.load %arg6[%240, %c0_60, %c0_61] : memref<8x2x32xf32, #tpu.memory_space<vmem>>, vector<1x2x32xf32>
    %242 = vector.shape_cast %241 : vector<1x2x32xf32> to vector<2x32xf32>
    %243 = vector.shape_cast %239 : vector<2x32xf32> to vector<1x2x32xf32>
    tpu.vector_store %arg6[%240, %c0_60, %c0_61], %243 {strides = array<i32>} : memref<8x2x32xf32, #tpu.memory_space<vmem>>, vector<1x2x32xf32>,
    %c7_i32 = arith.constant 7 : i32
    %244 = arith.index_cast %c7_i32 : i32 to index
    %c0_62 = arith.constant 0 : index
    %c0_63 = arith.constant 0 : index
    %245 = vector.load %arg2[%244, %c0_62, %c0_63] : memref<8x2x128xf32, #tpu.memory_space<vmem>>, vector<1x2x128xf32>
    %246 = vector.shape_cast %245 : vector<1x2x128xf32> to vector<2x128xf32>
    %cst_64 = arith.constant dense<0.000000e+00> : vector<2x128xf32>
    %247 = tpu.matmul %239, %3, %cst_64 {dimension_numbers = #tpu.dot_dimension_numbers<[1], [0], [0], [1], [0, 0, 1, 1], [], []>} : vector<2x32xf32>, vector<32x128xf32>, vector<2x128xf32> -> vector<2x128xf32>
    %248 = arith.addf %246, %247 : vector<2x128xf32>
    %249 = vector.extract_strided_slice %248 {offsets = [0, 0], sizes = [2, 32], strides = [1, 1]} : vector<2x128xf32> to vector<2x32xf32>
    %250 = arith.negf %249 : vector<2x32xf32>
    %251 = math.exp %250 : vector<2x32xf32>
    %cst_65 = arith.constant 1.000000e+00 : f32
    %252 = vector.broadcast %cst_65 : f32 to vector<2x32xf32>
    %253 = arith.addf %252, %251 : vector<2x32xf32>
    %254 = arith.divf %252, %253 : vector<2x32xf32>
    %255 = vector.extract_strided_slice %248 {offsets = [0, 32], sizes = [2, 32], strides = [1, 1]} : vector<2x128xf32> to vector<2x32xf32>
    %256 = arith.negf %255 : vector<2x32xf32>
    %257 = math.exp %256 : vector<2x32xf32>
    %cst_66 = arith.constant 1.000000e+00 : f32
    %258 = vector.broadcast %cst_66 : f32 to vector<2x32xf32>
    %259 = arith.addf %258, %257 : vector<2x32xf32>
    %260 = arith.divf %258, %259 : vector<2x32xf32>
    %261 = vector.extract_strided_slice %248 {offsets = [0, 64], sizes = [2, 32], strides = [1, 1]} : vector<2x128xf32> to vector<2x32xf32>
    %262 = math.tanh %261 : vector<2x32xf32>
    %263 = vector.extract_strided_slice %248 {offsets = [0, 96], sizes = [2, 32], strides = [1, 1]} : vector<2x128xf32> to vector<2x32xf32>
    %264 = arith.negf %263 : vector<2x32xf32>
    %265 = math.exp %264 : vector<2x32xf32>
    %cst_67 = arith.constant 1.000000e+00 : f32
    %266 = vector.broadcast %cst_67 : f32 to vector<2x32xf32>
    %267 = arith.addf %266, %265 : vector<2x32xf32>
    %268 = arith.divf %266, %267 : vector<2x32xf32>
    %269 = arith.mulf %260, %237 : vector<2x32xf32>
    %270 = arith.mulf %254, %262 : vector<2x32xf32>
    %271 = arith.addf %269, %270 : vector<2x32xf32>
    %272 = math.tanh %271 : vector<2x32xf32>
    %273 = arith.mulf %268, %272 : vector<2x32xf32>
    %274 = arith.index_cast %c7_i32 : i32 to index
    %c0_68 = arith.constant 0 : index
    %c0_69 = arith.constant 0 : index
    %275 = vector.load %arg6[%274, %c0_68, %c0_69] : memref<8x2x32xf32, #tpu.memory_space<vmem>>, vector<1x2x32xf32>
    %276 = vector.shape_cast %275 : vector<1x2x32xf32> to vector<2x32xf32>
    %277 = vector.shape_cast %273 : vector<2x32xf32> to vector<1x2x32xf32>
    tpu.vector_store %arg6[%274, %c0_68, %c0_69], %277 {strides = array<i32>} : memref<8x2x32xf32, #tpu.memory_space<vmem>>, vector<1x2x32xf32>,
    %c8_i32 = arith.constant 8 : i32
    %c0_70 = arith.constant 0 : index
    %c0_71 = arith.constant 0 : index
    %278 = vector.load %arg7[%c0_70, %c0_71] : memref<2x32xf32, #tpu.memory_space<vmem>>, vector<2x32xf32>
    tpu.vector_store %arg7[%c0_70, %c0_71], %273 {strides = array<i32>} : memref<2x32xf32, #tpu.memory_space<vmem>>, vector<2x32xf32>,
    %c0_72 = arith.constant 0 : index
    %c0_73 = arith.constant 0 : index
    %279 = vector.load %arg8[%c0_72, %c0_73] : memref<2x32xf32, #tpu.memory_space<vmem>>, vector<2x32xf32>
    tpu.vector_store %arg8[%c0_72, %c0_73], %271 {strides = array<i32>} : memref<2x32xf32, #tpu.memory_space<vmem>>, vector<2x32xf32>,
    return
  }
  func.func @transform_0(%arg0: i32, %arg1: i32) -> (i32, i32, i32) {
    %c0_i32 = arith.constant 0 : i32
    %c0_i32_0 = arith.constant 0 : i32
    return %arg1, %arg0, %c0_i32 : i32, i32, i32
  }
  func.func @transform_1(%arg0: i32, %arg1: i32) -> (i32, i32) {
    %c0_i32 = arith.constant 0 : i32
    %c0_i32_0 = arith.constant 0 : i32
    %c0_i32_1 = arith.constant 0 : i32
    return %c0_i32, %c0_i32_0 : i32, i32
  }
  func.func @transform_2(%arg0: i32, %arg1: i32) -> (i32, i32) {
    %c0_i32 = arith.constant 0 : i32
    %c0_i32_0 = arith.constant 0 : i32
    return %arg0, %c0_i32 : i32, i32
  }
  func.func @transform_3(%arg0: i32, %arg1: i32) -> (i32, i32) {
    %c0_i32 = arith.constant 0 : i32
    %c0_i32_0 = arith.constant 0 : i32
    return %arg0, %c0_i32 : i32, i32
  }
  func.func @transform_4(%arg0: i32, %arg1: i32) -> (i32, i32, i32) {
    %c0_i32 = arith.constant 0 : i32
    %c0_i32_0 = arith.constant 0 : i32
    return %arg1, %arg0, %c0_i32 : i32, i32, i32
  }
  func.func @transform_5(%arg0: i32, %arg1: i32) -> (i32, i32) {
    %c0_i32 = arith.constant 0 : i32
    %c0_i32_0 = arith.constant 0 : i32
    return %arg0, %c0_i32 : i32, i32
  }
  func.func @transform_6(%arg0: i32, %arg1: i32) -> (i32, i32) {
    %c0_i32 = arith.constant 0 : i32
    %c0_i32_0 = arith.constant 0 : i32
    return %arg0, %c0_i32 : i32, i32
  }
}

</mosaic_0001>

<llo_original>
// kernel: tpu_custom_call.1
$region0: #{tpu_custom_call.1}
  #allocation0 [shape = 'u32[]', space=smem, size = 0x4, offset = 0x4, fixed_abs, tag = 'smem constant byte address 0x4 - core index']
  #allocation1 [shape = 'u32[144,128]{1,0:T(1,128)}', space=vmem, size = 0x12000, scoped, tag = 'internal scratch']
  %s0 = inlined_call_operand.hbm [shape: f32[8,2,128], index: 0, kind: input, shape index: {}]
  %s1 = inlined_call_operand.hbm [shape: f32[32,128], index: 1, kind: input, shape index: {}]
  %s2 = inlined_call_operand.vmem [shape: f32[2,32], index: 2, kind: input, shape index: {}]
  %s3 = inlined_call_operand.vmem [shape: f32[2,32], index: 3, kind: input, shape index: {}]
  %s4 = inlined_call_operand.hbm [shape: f32[8,2,32], index: 4, kind: output, shape index: {0}]
  %s5 = inlined_call_operand.hbm [shape: f32[2,32], index: 5, kind: output, shape index: {1}]
  %s6 = inlined_call_operand.hbm [shape: f32[2,32], index: 6, kind: output, shape index: {2}]
  %7 = xla_tuple %s4, %s5, %s6
  %s8 = sld [smem:[#allocation0]]
  $region54: #{tpu_custom_call.1} parent=0
    _
  %s10 = ssub.s32 1, %s8
  %s11 = scalar_select 0, %s10, %s8
  $region1: #{tpu_custom_call.1} parent=0
    #allocation2 [shape = 'u8[8192]{0}', space=vmem, size = 0x2000, scoped, tag = 'input window, operand 0, single buffered']
    #allocation3 [shape = 's32[1]{0}', space=sflag, size = 0x4, scoped, tag = 'scoped memory for tpu_custom_call.1']
    #allocation4 [shape = 's32[1]{0}', space=sflag, size = 0x4, scoped, tag = 'scoped memory for tpu_custom_call.1']
    #allocation5 [shape = 'u8[16384]{0}', space=vmem, size = 0x4000, scoped, tag = 'input window, operand 1, single buffered']
    #allocation6 [shape = 's32[1]{0}', space=sflag, size = 0x4, scoped, tag = 'scoped memory for tpu_custom_call.1']
    #allocation7 [shape = 'u8[8192]{0}', space=vmem, size = 0x2000, scoped, tag = 'output window, operand 0, single buffered']
    #allocation8 [shape = 'u8[1024]{0}', space=vmem, size = 0x400, scoped, tag = 'output window, operand 1, single buffered']
    #allocation9 [shape = 's32[1]{0}', space=sflag, size = 0x4, scoped, tag = 'scoped memory for tpu_custom_call.1']
    #allocation10 [shape = 'u8[1024]{0}', space=vmem, size = 0x400, scoped, tag = 'output window, operand 2, single buffered']
    %12 = vsyncpa [#allocation3], 0
    %13 = vsyncpa [#allocation6], 0
    %14 = vsyncpa [#allocation4], 0
    %15 = vsyncpa [#allocation9], 0
    // Predicated region
    $region2: #{tpu_custom_call.1} parent=1 // pred_check
      _
    $region3: #{tpu_custom_call.1} parent=1 // pred_check_branch
      %17 = sbr.rel (0) target = $region5
    $region4: #{tpu_custom_call.1} parent=1 // pred_region
      %s19 = ssub.s32 256, 256
      %20 = vsyncadd [#allocation3], %s19
      %s21 = sshll.u32 [#allocation2], 4
      %s22 = int_to_ptr.vmem [resolvable:$true] %s21
      %27 = dma.hbm_to_vmem [thread:$0]  %s0, 256, %s22, [#allocation3], 32, 32, 2
    $region5: #{tpu_custom_call.1} parent=1 // pred_fallthru
      _
    // Predicated region
    $region6: #{tpu_custom_call.1} parent=1 // pred_check
      _
    $region7: #{tpu_custom_call.1} parent=1 // pred_check_branch
      %29 = sbr.rel (0) target = $region9
    $region8: #{tpu_custom_call.1} parent=1 // pred_region
      %s31 = ssub.s32 512, 512
      %32 = vsyncadd [#allocation6], %s31
      %s33 = sshll.u32 [#allocation5], 4
      %s34 = int_to_ptr.vmem [resolvable:$true] %s33
      %39 = dma.hbm_to_vmem [thread:$0]  %s1, 512, %s34, [#allocation6], 128, 128, 8
    $region9: #{tpu_custom_call.1} parent=1 // pred_fallthru
      _
    // Predicated region
    $region10: #{tpu_custom_call.1} parent=1 // pred_check
      _
    $region11: #{tpu_custom_call.1} parent=1 // pred_check_branch
      %41 = sbr.rel (0) target = $region13
    $region12: #{tpu_custom_call.1} parent=1 // pred_region
      _
    $region13: #{tpu_custom_call.1} parent=1 // pred_fallthru
      _
    // Predicated region
    $region14: #{tpu_custom_call.1} parent=1 // pred_check
      _
    $region15: #{tpu_custom_call.1} parent=1 // pred_check_branch
      %43 = sbr.rel (0) target = $region17
    $region16: #{tpu_custom_call.1} parent=1 // pred_region
      _
    $region17: #{tpu_custom_call.1} parent=1 // pred_fallthru
      _
    // Predicated region
    $region18: #{tpu_custom_call.1} parent=1 // pred_check
      _
    $region19: #{tpu_custom_call.1} parent=1 // pred_check_branch
      %45 = sbr.rel (0) target = $region21
    $region20: #{tpu_custom_call.1} parent=1 // pred_region
      %46 = dma.done [#allocation3], 256
    $region21: #{tpu_custom_call.1} parent=1 // pred_fallthru
      _
    // Predicated region
    $region22: #{tpu_custom_call.1} parent=1 // pred_check
      _
    $region23: #{tpu_custom_call.1} parent=1 // pred_check_branch
      %48 = sbr.rel (0) target = $region25
    $region24: #{tpu_custom_call.1} parent=1 // pred_region
      %49 = dma.done [#allocation6], 512
    $region25: #{tpu_custom_call.1} parent=1 // pred_fallthru
      _
    %p50 = scmp.eq.s32.totalorder 0, 0
    // Predicated region
    $region26: #{tpu_custom_call.1} parent=1 // pred_check
      %p51 = pneg %p50
    $region27: #{tpu_custom_call.1} parent=1 // pred_check_branch
      %53 = sbr.rel (%p51) target = $region29
    $region28: #{tpu_custom_call.1} parent=1 // pred_region
      %v54 = vld [vmem:[%s2] sm:$0x3]
      %vm55 = vcmask 254976
      %56 = vst.msk [vmem:[#allocation8] sm:$0x3] %vm55, %v54
      %v57 = vld [vmem:[%s3] sm:$0x3]
      %58 = vst.msk [vmem:[#allocation10] sm:$0x3] %vm55, %v57
    $region29: #{tpu_custom_call.1} parent=1 // pred_fallthru
      _
    %v59 = vld [vmem:[#allocation5] sm:$0xff]
    %v60 = vld [vmem:[#allocation5 + $0x8] sm:$0xff]
    %v61 = vld [vmem:[#allocation5 + $0x10] sm:$0xff]
    %v62 = vld [vmem:[#allocation5 + $0x18] sm:$0xff]
    %v63 = vld [vmem:[#allocation8] sm:$0x3]
    %v64 = vld [vmem:[#allocation10] sm:$0x3]
    %v65 = vld [vmem:[#allocation2] sm:$0x3]
    %vm66 = vcmask 261120
    %v68 = vsel %vm66, %v63, 0
    %70 = vmatprep.subr.mxu0 0.0
    %71 = vmatpush1.msra.mxu0 0.0
    %72 = vmatprep.subr.mxu0 0.0
    %73 = vmatpush1.msra.mxu0 0.0
    %74 = vmatprep.subr.mxu0 0.0
    %75 = vmatpush1.msra.mxu0 0.0
    %76 = vmatprep.subr.mxu0 0.0
    %77 = vmatpush1.msra.mxu0 0.0
    %78 = vmatprep.subr.mxu0 0.0
    %79 = vmatpush1.msra.mxu0 0.0
    %80 = vmatprep.subr.mxu0 0.0
    %81 = vmatpush1.msra.mxu0 0.0
    %82 = vmatprep.subr.mxu0 0.0
    %83 = vmatpush1.msra.mxu0 0.0
    %84 = vmatprep.subr.mxu0 0.0
    %85 = vmatpush1.msra.mxu0 0.0
    %86 = vmatprep.subr.mxu0 0.0
    %87 = vmatpush1.msra.mxu0 0.0
    %88 = vmatprep.subr.mxu0 0.0
    %89 = vmatpush1.msra.mxu0 0.0
    %90 = vmatprep.subr.mxu0 0.0
    %91 = vmatpush1.msra.mxu0 0.0
    %92 = vmatprep.subr.mxu0 0.0
    %93 = vmatpush1.msra.mxu0 0.0
    %94 = vmatprep.subr.mxu0 0.0
    %95 = vmatpush1.msra.mxu0 %v62
    %96 = vmatprep.subr.mxu0 0.0
    %97 = vmatpush1.msra.mxu0 %v61
    %98 = vmatprep.subr.mxu0 0.0
    %99 = vmatpush1.msra.mxu0 %v60
    %100 = vmatprep.subr.mxu0 0.0
    %101 = vmatpush1.msra.mxu0 %v59
    %102 = vmatprep.subr.mxu0 0.0
    %103 = vmatpush2.msra.mxu0 0.0
    %104 = vmatprep.subr.mxu0 0.0
    %105 = vmatpush2.msra.mxu0 0.0
    %106 = vmatprep.subr.mxu0 0.0
    %107 = vmatpush2.msra.mxu0 0.0
    %108 = vmatprep.subr.mxu0 0.0
    %109 = vmatpush2.msra.mxu0 0.0
    %110 = vmatprep.subr.mxu0 0.0
    %111 = vmatpush2.msra.mxu0 0.0
    %112 = vmatprep.subr.mxu0 0.0
    %113 = vmatpush2.msra.mxu0 0.0
    %114 = vmatprep.subr.mxu0 0.0
    %115 = vmatpush2.msra.mxu0 0.0
    %116 = vmatprep.subr.mxu0 0.0
    %117 = vmatpush2.msra.mxu0 0.0
    %118 = vmatprep.subr.mxu0 0.0
    %119 = vmatpush2.msra.mxu0 0.0
    %120 = vmatprep.subr.mxu0 0.0
    %121 = vmatpush2.msra.mxu0 0.0
    %122 = vmatprep.subr.mxu0 0.0
    %123 = vmatpush2.msra.mxu0 0.0
    %124 = vmatprep.subr.mxu0 0.0
    %125 = vmatpush2.msra.mxu0 0.0
    %126 = vmatprep.subr.mxu0 0.0
    %127 = vmatpush2.msra.mxu0 0.0
    %128 = vmatprep.subr.mxu0 0.0
    %129 = vmatpush2.msra.mxu0 0.0
    %130 = vmatprep.subr.mxu0 0.0
    %131 = vmatpush2.msra.mxu0 0.0
    %132 = vmatprep.subr.mxu0 0.0
    %133 = vmatpush2.msra.mxu0 0.0
    %134 = vmatprep.mubr.f32.mxu0 0.0
    %135 = vmatmul.mubr.f32.gmra.mxu0 %v68
    %v136 = vpop.f32.mrf.mxu0
    %v137 = vadd.f32 0.0, %v136
    %v138 = vpop.f32.mrf.mxu0
    %139 = vdwg.mxu0
    %v140 = vadd.f32 %v65, %v137
    %v141 = vxor.u32 %v140, 2147483648
    %v142 = vmul.f32 %v141, 1.442695
    %v143 = vpow.pop %v142
    %v144 = vadd.f32 %v143, 1.0
    %v145 = vrcp.pop %v144
    %v146 = vmul.f32 1.0, %v145
    %v147 = vtanh.pop %v140
    %149 = vrot.lane.b32.xlu0 %v64, 32
    %v150 = vpop.permute.xlu0 %149
    %v152 = vmul.f32 %v146, %v150
    %154 = vrot.lane.b32.xlu0 %v147, 64
    %v155 = vpop.permute.xlu0 %154
    %v157 = vmul.f32 %v146, %v155
    %159 = vrot.lane.b32.xlu0 %v157, 32
    %v160 = vpop.permute.xlu0 %159
    %v162 = vadd.f32 %v152, %v160
    %v163 = vtanh.pop %v162
    %165 = vrot.lane.b32.xlu0 %v163, 64
    %v166 = vpop.permute.xlu0 %165
    %v168 = vmul.f32 %v146, %v166
    %170 = vrot.lane.b32.xlu0 %v168, 32
    %v171 = vpop.permute.xlu0 %170
    %vm173 = vcmask 254976
    %174 = vst.msk [vmem:[#allocation7] sm:$0x3] %vm173, %v171
    %s175 = scalar_lea.vmem [#allocation2], 2
    %v176 = vld [vmem:[%s175] sm:$0x3]
    %v177 = vsel %vm66, %v171, 0
    %179 = vmatprep.subr.mxu0 0.0
    %180 = vmatpush1.msra.mxu0 0.0
    %181 = vmatprep.subr.mxu0 0.0
    %182 = vmatpush1.msra.mxu0 0.0
    %183 = vmatprep.subr.mxu0 0.0
    %184 = vmatpush1.msra.mxu0 0.0
    %185 = vmatprep.subr.mxu0 0.0
    %186 = vmatpush1.msra.mxu0 0.0
    %187 = vmatprep.subr.mxu0 0.0
    %188 = vmatpush1.msra.mxu0 0.0
    %189 = vmatprep.subr.mxu0 0.0
    %190 = vmatpush1.msra.mxu0 0.0
    %191 = vmatprep.subr.mxu0 0.0
    %192 = vmatpush1.msra.mxu0 0.0
    %193 = vmatprep.subr.mxu0 0.0
    %194 = vmatpush1.msra.mxu0 0.0
    %195 = vmatprep.subr.mxu0 0.0
    %196 = vmatpush1.msra.mxu0 0.0
    %197 = vmatprep.subr.mxu0 0.0
    %198 = vmatpush1.msra.mxu0 0.0
    %199 = vmatprep.subr.mxu0 0.0
    %200 = vmatpush1.msra.mxu0 0.0
    %201 = vmatprep.subr.mxu0 0.0
    %202 = vmatpush1.msra.mxu0 0.0
    %203 = vmatprep.subr.mxu0 0.0
    %204 = vmatpush1.msra.mxu0 %v62
    %205 = vmatprep.subr.mxu0 0.0
    %206 = vmatpush1.msra.mxu0 %v61
    %207 = vmatprep.subr.mxu0 0.0
    %208 = vmatpush1.msra.mxu0 %v60
    %209 = vmatprep.subr.mxu0 0.0
    %210 = vmatpush1.msra.mxu0 %v59
    %211 = vmatprep.subr.mxu0 0.0
    %212 = vmatpush2.msra.mxu0 0.0
    %213 = vmatprep.subr.mxu0 0.0
    %214 = vmatpush2.msra.mxu0 0.0
    %215 = vmatprep.subr.mxu0 0.0
    %216 = vmatpush2.msra.mxu0 0.0
    %217 = vmatprep.subr.mxu0 0.0
    %218 = vmatpush2.msra.mxu0 0.0
    %219 = vmatprep.subr.mxu0 0.0
    %220 = vmatpush2.msra.mxu0 0.0
    %221 = vmatprep.subr.mxu0 0.0
    %222 = vmatpush2.msra.mxu0 0.0
    %223 = vmatprep.subr.mxu0 0.0
    %224 = vmatpush2.msra.mxu0 0.0
    %225 = vmatprep.subr.mxu0 0.0
    %226 = vmatpush2.msra.mxu0 0.0
    %227 = vmatprep.subr.mxu0 0.0
    %228 = vmatpush2.msra.mxu0 0.0
    %229 = vmatprep.subr.mxu0 0.0
    %230 = vmatpush2.msra.mxu0 0.0
    %231 = vmatprep.subr.mxu0 0.0
    %232 = vmatpush2.msra.mxu0 0.0
    %233 = vmatprep.subr.mxu0 0.0
    %234 = vmatpush2.msra.mxu0 0.0
    %235 = vmatprep.subr.mxu0 0.0
    %236 = vmatpush2.msra.mxu0 0.0
    %237 = vmatprep.subr.mxu0 0.0
    %238 = vmatpush2.msra.mxu0 0.0
    %239 = vmatprep.subr.mxu0 0.0
    %240 = vmatpush2.msra.mxu0 0.0
    %241 = vmatprep.subr.mxu0 0.0
    %242 = vmatpush2.msra.mxu0 0.0
    %243 = vmatprep.mubr.f32.mxu0 0.0
    %244 = vmatmul.mubr.f32.gmra.mxu0 %v177
    %v245 = vpop.f32.mrf.mxu0
    %v246 = vadd.f32 0.0, %v245
    %v247 = vpop.f32.mrf.mxu0
    %248 = vdwg.mxu0
    %v249 = vadd.f32 %v176, %v246
    %v250 = vxor.u32 %v249, 2147483648
    %v251 = vmul.f32 %v250, 1.442695
    %v252 = vpow.pop %v251
    %v253 = vadd.f32 %v252, 1.0
    %v254 = vrcp.pop %v253
    %v255 = vmul.f32 1.0, %v254
    %v256 = vtanh.pop %v249
    %v257 = vmul.f32 %v255, %v162
    %259 = vrot.lane.b32.xlu0 %v256, 64
    %v260 = vpop.permute.xlu0 %259
    %v262 = vmul.f32 %v255, %v260
    %264 = vrot.lane.b32.xlu0 %v262, 32
    %v265 = vpop.permute.xlu0 %264
    %v267 = vadd.f32 %v257, %v265
    %v268 = vtanh.pop %v267
    %270 = vrot.lane.b32.xlu0 %v268, 64
    %v271 = vpop.permute.xlu0 %270
    %v273 = vmul.f32 %v255, %v271
    %275 = vrot.lane.b32.xlu0 %v273, 32
    %v276 = vpop.permute.xlu0 %275
    %s278 = scalar_lea.vmem [#allocation7], 2
    %279 = vst.msk [vmem:[%s278] sm:$0x3] %vm173, %v276
    %s280 = scalar_lea.vmem [#allocation2], 4
    %v281 = vld [vmem:[%s280] sm:$0x3]
    %v282 = vsel %vm66, %v276, 0
    %284 = vmatprep.subr.mxu0 0.0
    %285 = vmatpush1.msra.mxu0 0.0
    %286 = vmatprep.subr.mxu0 0.0
    %287 = vmatpush1.msra.mxu0 0.0
    %288 = vmatprep.subr.mxu0 0.0
    %289 = vmatpush1.msra.mxu0 0.0
    %290 = vmatprep.subr.mxu0 0.0
    %291 = vmatpush1.msra.mxu0 0.0
    %292 = vmatprep.subr.mxu0 0.0
    %293 = vmatpush1.msra.mxu0 0.0
    %294 = vmatprep.subr.mxu0 0.0
    %295 = vmatpush1.msra.mxu0 0.0
    %296 = vmatprep.subr.mxu0 0.0
    %297 = vmatpush1.msra.mxu0 0.0
    %298 = vmatprep.subr.mxu0 0.0
    %299 = vmatpush1.msra.mxu0 0.0
    %300 = vmatprep.subr.mxu0 0.0
    %301 = vmatpush1.msra.mxu0 0.0
    %302 = vmatprep.subr.mxu0 0.0
    %303 = vmatpush1.msra.mxu0 0.0
    %304 = vmatprep.subr.mxu0 0.0
    %305 = vmatpush1.msra.mxu0 0.0
    %306 = vmatprep.subr.mxu0 0.0
    %307 = vmatpush1.msra.mxu0 0.0
    %308 = vmatprep.subr.mxu0 0.0
    %309 = vmatpush1.msra.mxu0 %v62
    %310 = vmatprep.subr.mxu0 0.0
    %311 = vmatpush1.msra.mxu0 %v61
    %312 = vmatprep.subr.mxu0 0.0
    %313 = vmatpush1.msra.mxu0 %v60
    %314 = vmatprep.subr.mxu0 0.0
    %315 = vmatpush1.msra.mxu0 %v59
    %316 = vmatprep.subr.mxu0 0.0
    %317 = vmatpush2.msra.mxu0 0.0
    %318 = vmatprep.subr.mxu0 0.0
    %319 = vmatpush2.msra.mxu0 0.0
    %320 = vmatprep.subr.mxu0 0.0
    %321 = vmatpush2.msra.mxu0 0.0
    %322 = vmatprep.subr.mxu0 0.0
    %323 = vmatpush2.msra.mxu0 0.0
    %324 = vmatprep.subr.mxu0 0.0
    %325 = vmatpush2.msra.mxu0 0.0
    %326 = vmatprep.subr.mxu0 0.0
    %327 = vmatpush2.msra.mxu0 0.0
    %328 = vmatprep.subr.mxu0 0.0
    %329 = vmatpush2.msra.mxu0 0.0
    %330 = vmatprep.subr.mxu0 0.0
    %331 = vmatpush2.msra.mxu0 0.0
    %332 = vmatprep.subr.mxu0 0.0
    %333 = vmatpush2.msra.mxu0 0.0
    %334 = vmatprep.subr.mxu0 0.0
    %335 = vmatpush2.msra.mxu0 0.0
    %336 = vmatprep.subr.mxu0 0.0
    %337 = vmatpush2.msra.mxu0 0.0
    %338 = vmatprep.subr.mxu0 0.0
    %339 = vmatpush2.msra.mxu0 0.0
    %340 = vmatprep.subr.mxu0 0.0
    %341 = vmatpush2.msra.mxu0 0.0
    %342 = vmatprep.subr.mxu0 0.0
    %343 = vmatpush2.msra.mxu0 0.0
    %344 = vmatprep.subr.mxu0 0.0
    %345 = vmatpush2.msra.mxu0 0.0
    %346 = vmatprep.subr.mxu0 0.0
    %347 = vmatpush2.msra.mxu0 0.0
    %348 = vmatprep.mubr.f32.mxu0 0.0
    %349 = vmatmul.mubr.f32.gmra.mxu0 %v282
    %v350 = vpop.f32.mrf.mxu0
    %v351 = vadd.f32 0.0, %v350
    %v352 = vpop.f32.mrf.mxu0
    %353 = vdwg.mxu0
    %v354 = vadd.f32 %v281, %v351
    %v355 = vxor.u32 %v354, 2147483648
    %v356 = vmul.f32 %v355, 1.442695
    %v357 = vpow.pop %v356
    %v358 = vadd.f32 %v357, 1.0
    %v359 = vrcp.pop %v358
    %v360 = vmul.f32 1.0, %v359
    %v361 = vtanh.pop %v354
    %v362 = vmul.f32 %v360, %v267
    %364 = vrot.lane.b32.xlu0 %v361, 64
    %v365 = vpop.permute.xlu0 %364
    %v367 = vmul.f32 %v360, %v365
    %369 = vrot.lane.b32.xlu0 %v367, 32
    %v370 = vpop.permute.xlu0 %369
    %v372 = vadd.f32 %v362, %v370
    %v373 = vtanh.pop %v372
    %375 = vrot.lane.b32.xlu0 %v373, 64
    %v376 = vpop.permute.xlu0 %375
    %v378 = vmul.f32 %v360, %v376
    %380 = vrot.lane.b32.xlu0 %v378, 32
    %v381 = vpop.permute.xlu0 %380
    %s383 = scalar_lea.vmem [#allocation7], 4
    %384 = vst.msk [vmem:[%s383] sm:$0x3] %vm173, %v381
    %s385 = scalar_lea.vmem [#allocation2], 6
    %v386 = vld [vmem:[%s385] sm:$0x3]
    %v387 = vsel %vm66, %v381, 0
    %389 = vmatprep.subr.mxu0 0.0
    %390 = vmatpush1.msra.mxu0 0.0
    %391 = vmatprep.subr.mxu0 0.0
    %392 = vmatpush1.msra.mxu0 0.0
    %393 = vmatprep.subr.mxu0 0.0
    %394 = vmatpush1.msra.mxu0 0.0
    %395 = vmatprep.subr.mxu0 0.0
    %396 = vmatpush1.msra.mxu0 0.0
    %397 = vmatprep.subr.mxu0 0.0
    %398 = vmatpush1.msra.mxu0 0.0
    %399 = vmatprep.subr.mxu0 0.0
    %400 = vmatpush1.msra.mxu0 0.0
    %401 = vmatprep.subr.mxu0 0.0
    %402 = vmatpush1.msra.mxu0 0.0
    %403 = vmatprep.subr.mxu0 0.0
    %404 = vmatpush1.msra.mxu0 0.0
    %405 = vmatprep.subr.mxu0 0.0
    %406 = vmatpush1.msra.mxu0 0.0
    %407 = vmatprep.subr.mxu0 0.0
    %408 = vmatpush1.msra.mxu0 0.0
    %409 = vmatprep.subr.mxu0 0.0
    %410 = vmatpush1.msra.mxu0 0.0
    %411 = vmatprep.subr.mxu0 0.0
    %412 = vmatpush1.msra.mxu0 0.0
    %413 = vmatprep.subr.mxu0 0.0
    %414 = vmatpush1.msra.mxu0 %v62
    %415 = vmatprep.subr.mxu0 0.0
    %416 = vmatpush1.msra.mxu0 %v61
    %417 = vmatprep.subr.mxu0 0.0
    %418 = vmatpush1.msra.mxu0 %v60
    %419 = vmatprep.subr.mxu0 0.0
    %420 = vmatpush1.msra.mxu0 %v59
    %421 = vmatprep.subr.mxu0 0.0
    %422 = vmatpush2.msra.mxu0 0.0
    %423 = vmatprep.subr.mxu0 0.0
    %424 = vmatpush2.msra.mxu0 0.0
    %425 = vmatprep.subr.mxu0 0.0
    %426 = vmatpush2.msra.mxu0 0.0
    %427 = vmatprep.subr.mxu0 0.0
    %428 = vmatpush2.msra.mxu0 0.0
    %429 = vmatprep.subr.mxu0 0.0
    %430 = vmatpush2.msra.mxu0 0.0
    %431 = vmatprep.subr.mxu0 0.0
    %432 = vmatpush2.msra.mxu0 0.0
    %433 = vmatprep.subr.mxu0 0.0
    %434 = vmatpush2.msra.mxu0 0.0
    %435 = vmatprep.subr.mxu0 0.0
    %436 = vmatpush2.msra.mxu0 0.0
    %437 = vmatprep.subr.mxu0 0.0
    %438 = vmatpush2.msra.mxu0 0.0
    %439 = vmatprep.subr.mxu0 0.0
    %440 = vmatpush2.msra.mxu0 0.0
    %441 = vmatprep.subr.mxu0 0.0
    %442 = vmatpush2.msra.mxu0 0.0
    %443 = vmatprep.subr.mxu0 0.0
    %444 = vmatpush2.msra.mxu0 0.0
    %445 = vmatprep.subr.mxu0 0.0
    %446 = vmatpush2.msra.mxu0 0.0
    %447 = vmatprep.subr.mxu0 0.0
    %448 = vmatpush2.msra.mxu0 0.0
    %449 = vmatprep.subr.mxu0 0.0
    %450 = vmatpush2.msra.mxu0 0.0
    %451 = vmatprep.subr.mxu0 0.0
    %452 = vmatpush2.msra.mxu0 0.0
    %453 = vmatprep.mubr.f32.mxu0 0.0
    %454 = vmatmul.mubr.f32.gmra.mxu0 %v387
    %v455 = vpop.f32.mrf.mxu0
    %v456 = vadd.f32 0.0, %v455
    %v457 = vpop.f32.mrf.mxu0
    %458 = vdwg.mxu0
    %v459 = vadd.f32 %v386, %v456
    %v460 = vxor.u32 %v459, 2147483648
    %v461 = vmul.f32 %v460, 1.442695
    %v462 = vpow.pop %v461
    %v463 = vadd.f32 %v462, 1.0
    %v464 = vrcp.pop %v463
    %v465 = vmul.f32 1.0, %v464
    %v466 = vtanh.pop %v459
    %v467 = vmul.f32 %v465, %v372
    %469 = vrot.lane.b32.xlu0 %v466, 64
    %v470 = vpop.permute.xlu0 %469
    %v472 = vmul.f32 %v465, %v470
    %474 = vrot.lane.b32.xlu0 %v472, 32
    %v475 = vpop.permute.xlu0 %474
    %v477 = vadd.f32 %v467, %v475
    %v478 = vtanh.pop %v477
    %480 = vrot.lane.b32.xlu0 %v478, 64
    %v481 = vpop.permute.xlu0 %480
    %v483 = vmul.f32 %v465, %v481
    %485 = vrot.lane.b32.xlu0 %v483, 32
    %v486 = vpop.permute.xlu0 %485
    %s488 = scalar_lea.vmem [#allocation7], 6
    %489 = vst.msk [vmem:[%s488] sm:$0x3] %vm173, %v486
    %s490 = scalar_lea.vmem [#allocation2], 8
    %v491 = vld [vmem:[%s490] sm:$0x3]
    %v492 = vsel %vm66, %v486, 0
    %494 = vmatprep.subr.mxu0 0.0
    %495 = vmatpush1.msra.mxu0 0.0
    %496 = vmatprep.subr.mxu0 0.0
    %497 = vmatpush1.msra.mxu0 0.0
    %498 = vmatprep.subr.mxu0 0.0
    %499 = vmatpush1.msra.mxu0 0.0
    %500 = vmatprep.subr.mxu0 0.0
    %501 = vmatpush1.msra.mxu0 0.0
    %502 = vmatprep.subr.mxu0 0.0
    %503 = vmatpush1.msra.mxu0 0.0
    %504 = vmatprep.subr.mxu0 0.0
    %505 = vmatpush1.msra.mxu0 0.0
    %506 = vmatprep.subr.mxu0 0.0
    %507 = vmatpush1.msra.mxu0 0.0
    %508 = vmatprep.subr.mxu0 0.0
    %509 = vmatpush1.msra.mxu0 0.0
    %510 = vmatprep.subr.mxu0 0.0
    %511 = vmatpush1.msra.mxu0 0.0
    %512 = vmatprep.subr.mxu0 0.0
    %513 = vmatpush1.msra.mxu0 0.0
    %514 = vmatprep.subr.mxu0 0.0
    %515 = vmatpush1.msra.mxu0 0.0
    %516 = vmatprep.subr.mxu0 0.0
    %517 = vmatpush1.msra.mxu0 0.0
    %518 = vmatprep.subr.mxu0 0.0
    %519 = vmatpush1.msra.mxu0 %v62
    %520 = vmatprep.subr.mxu0 0.0
    %521 = vmatpush1.msra.mxu0 %v61
    %522 = vmatprep.subr.mxu0 0.0
    %523 = vmatpush1.msra.mxu0 %v60
    %524 = vmatprep.subr.mxu0 0.0
    %525 = vmatpush1.msra.mxu0 %v59
    %526 = vmatprep.subr.mxu0 0.0
    %527 = vmatpush2.msra.mxu0 0.0
    %528 = vmatprep.subr.mxu0 0.0
    %529 = vmatpush2.msra.mxu0 0.0
    %530 = vmatprep.subr.mxu0 0.0
    %531 = vmatpush2.msra.mxu0 0.0
    %532 = vmatprep.subr.mxu0 0.0
    %533 = vmatpush2.msra.mxu0 0.0
    %534 = vmatprep.subr.mxu0 0.0
    %535 = vmatpush2.msra.mxu0 0.0
    %536 = vmatprep.subr.mxu0 0.0
    %537 = vmatpush2.msra.mxu0 0.0
    %538 = vmatprep.subr.mxu0 0.0
    %539 = vmatpush2.msra.mxu0 0.0
    %540 = vmatprep.subr.mxu0 0.0
    %541 = vmatpush2.msra.mxu0 0.0
    %542 = vmatprep.subr.mxu0 0.0
    %543 = vmatpush2.msra.mxu0 0.0
    %544 = vmatprep.subr.mxu0 0.0
    %545 = vmatpush2.msra.mxu0 0.0
    %546 = vmatprep.subr.mxu0 0.0
    %547 = vmatpush2.msra.mxu0 0.0
    %548 = vmatprep.subr.mxu0 0.0
    %549 = vmatpush2.msra.mxu0 0.0
    %550 = vmatprep.subr.mxu0 0.0
    %551 = vmatpush2.msra.mxu0 0.0
    %552 = vmatprep.subr.mxu0 0.0
    %553 = vmatpush2.msra.mxu0 0.0
    %554 = vmatprep.subr.mxu0 0.0
    %555 = vmatpush2.msra.mxu0 0.0
    %556 = vmatprep.subr.mxu0 0.0
    %557 = vmatpush2.msra.mxu0 0.0
    %558 = vmatprep.mubr.f32.mxu0 0.0
    %559 = vmatmul.mubr.f32.gmra.mxu0 %v492
    %v560 = vpop.f32.mrf.mxu0
    %v561 = vadd.f32 0.0, %v560
    %v562 = vpop.f32.mrf.mxu0
    %563 = vdwg.mxu0
    %v564 = vadd.f32 %v491, %v561
    %v565 = vxor.u32 %v564, 2147483648
    %v566 = vmul.f32 %v565, 1.442695
    %v567 = vpow.pop %v566
    %v568 = vadd.f32 %v567, 1.0
    %v569 = vrcp.pop %v568
    %v570 = vmul.f32 1.0, %v569
    %v571 = vtanh.pop %v564
    %v572 = vmul.f32 %v570, %v477
    %574 = vrot.lane.b32.xlu0 %v571, 64
    %v575 = vpop.permute.xlu0 %574
    %v577 = vmul.f32 %v570, %v575
    %579 = vrot.lane.b32.xlu0 %v577, 32
    %v580 = vpop.permute.xlu0 %579
    %v582 = vadd.f32 %v572, %v580
    %v583 = vtanh.pop %v582
    %585 = vrot.lane.b32.xlu0 %v583, 64
    %v586 = vpop.permute.xlu0 %585
    %v588 = vmul.f32 %v570, %v586
    %590 = vrot.lane.b32.xlu0 %v588, 32
    %v591 = vpop.permute.xlu0 %590
    %s593 = scalar_lea.vmem [#allocation7], 8
    %594 = vst.msk [vmem:[%s593] sm:$0x3] %vm173, %v591
    %s595 = scalar_lea.vmem [#allocation2], 10
    %v596 = vld [vmem:[%s595] sm:$0x3]
    %v597 = vsel %vm66, %v591, 0
    %599 = vmatprep.subr.mxu0 0.0
    %600 = vmatpush1.msra.mxu0 0.0
    %601 = vmatprep.subr.mxu0 0.0
    %602 = vmatpush1.msra.mxu0 0.0
    %603 = vmatprep.subr.mxu0 0.0
    %604 = vmatpush1.msra.mxu0 0.0
    %605 = vmatprep.subr.mxu0 0.0
    %606 = vmatpush1.msra.mxu0 0.0
    %607 = vmatprep.subr.mxu0 0.0
    %608 = vmatpush1.msra.mxu0 0.0
    %609 = vmatprep.subr.mxu0 0.0
    %610 = vmatpush1.msra.mxu0 0.0
    %611 = vmatprep.subr.mxu0 0.0
    %612 = vmatpush1.msra.mxu0 0.0
    %613 = vmatprep.subr.mxu0 0.0
    %614 = vmatpush1.msra.mxu0 0.0
    %615 = vmatprep.subr.mxu0 0.0
    %616 = vmatpush1.msra.mxu0 0.0
    %617 = vmatprep.subr.mxu0 0.0
    %618 = vmatpush1.msra.mxu0 0.0
    %619 = vmatprep.subr.mxu0 0.0
    %620 = vmatpush1.msra.mxu0 0.0
    %621 = vmatprep.subr.mxu0 0.0
    %622 = vmatpush1.msra.mxu0 0.0
    %623 = vmatprep.subr.mxu0 0.0
    %624 = vmatpush1.msra.mxu0 %v62
    %625 = vmatprep.subr.mxu0 0.0
    %626 = vmatpush1.msra.mxu0 %v61
    %627 = vmatprep.subr.mxu0 0.0
    %628 = vmatpush1.msra.mxu0 %v60
    %629 = vmatprep.subr.mxu0 0.0
    %630 = vmatpush1.msra.mxu0 %v59
    %631 = vmatprep.subr.mxu0 0.0
    %632 = vmatpush2.msra.mxu0 0.0
    %633 = vmatprep.subr.mxu0 0.0
    %634 = vmatpush2.msra.mxu0 0.0
    %635 = vmatprep.subr.mxu0 0.0
    %636 = vmatpush2.msra.mxu0 0.0
    %637 = vmatprep.subr.mxu0 0.0
    %638 = vmatpush2.msra.mxu0 0.0
    %639 = vmatprep.subr.mxu0 0.0
    %640 = vmatpush2.msra.mxu0 0.0
    %641 = vmatprep.subr.mxu0 0.0
    %642 = vmatpush2.msra.mxu0 0.0
    %643 = vmatprep.subr.mxu0 0.0
    %644 = vmatpush2.msra.mxu0 0.0
    %645 = vmatprep.subr.mxu0 0.0
    %646 = vmatpush2.msra.mxu0 0.0
    %647 = vmatprep.subr.mxu0 0.0
    %648 = vmatpush2.msra.mxu0 0.0
    %649 = vmatprep.subr.mxu0 0.0
    %650 = vmatpush2.msra.mxu0 0.0
    %651 = vmatprep.subr.mxu0 0.0
    %652 = vmatpush2.msra.mxu0 0.0
    %653 = vmatprep.subr.mxu0 0.0
    %654 = vmatpush2.msra.mxu0 0.0
    %655 = vmatprep.subr.mxu0 0.0
    %656 = vmatpush2.msra.mxu0 0.0
    %657 = vmatprep.subr.mxu0 0.0
    %658 = vmatpush2.msra.mxu0 0.0
    %659 = vmatprep.subr.mxu0 0.0
    %660 = vmatpush2.msra.mxu0 0.0
    %661 = vmatprep.subr.mxu0 0.0
    %662 = vmatpush2.msra.mxu0 0.0
    %663 = vmatprep.mubr.f32.mxu0 0.0
    %664 = vmatmul.mubr.f32.gmra.mxu0 %v597
    %v665 = vpop.f32.mrf.mxu0
    %v666 = vadd.f32 0.0, %v665
    %v667 = vpop.f32.mrf.mxu0
    %668 = vdwg.mxu0
    %v669 = vadd.f32 %v596, %v666
    %v670 = vxor.u32 %v669, 2147483648
    %v671 = vmul.f32 %v670, 1.442695
    %v672 = vpow.pop %v671
    %v673 = vadd.f32 %v672, 1.0
    %v674 = vrcp.pop %v673
    %v675 = vmul.f32 1.0, %v674
    %v676 = vtanh.pop %v669
    %v677 = vmul.f32 %v675, %v582
    %679 = vrot.lane.b32.xlu0 %v676, 64
    %v680 = vpop.permute.xlu0 %679
    %v682 = vmul.f32 %v675, %v680
    %684 = vrot.lane.b32.xlu0 %v682, 32
    %v685 = vpop.permute.xlu0 %684
    %v687 = vadd.f32 %v677, %v685
    %v688 = vtanh.pop %v687
    %690 = vrot.lane.b32.xlu0 %v688, 64
    %v691 = vpop.permute.xlu0 %690
    %v693 = vmul.f32 %v675, %v691
    %695 = vrot.lane.b32.xlu0 %v693, 32
    %v696 = vpop.permute.xlu0 %695
    %s698 = scalar_lea.vmem [#allocation7], 10
    %699 = vst.msk [vmem:[%s698] sm:$0x3] %vm173, %v696
    %s700 = scalar_lea.vmem [#allocation2], 12
    %v701 = vld [vmem:[%s700] sm:$0x3]
    %v702 = vsel %vm66, %v696, 0
    %704 = vmatprep.subr.mxu0 0.0
    %705 = vmatpush1.msra.mxu0 0.0
    %706 = vmatprep.subr.mxu0 0.0
    %707 = vmatpush1.msra.mxu0 0.0
    %708 = vmatprep.subr.mxu0 0.0
    %709 = vmatpush1.msra.mxu0 0.0
    %710 = vmatprep.subr.mxu0 0.0
    %711 = vmatpush1.msra.mxu0 0.0
    %712 = vmatprep.subr.mxu0 0.0
    %713 = vmatpush1.msra.mxu0 0.0
    %714 = vmatprep.subr.mxu0 0.0
    %715 = vmatpush1.msra.mxu0 0.0
    %716 = vmatprep.subr.mxu0 0.0
    %717 = vmatpush1.msra.mxu0 0.0
    %718 = vmatprep.subr.mxu0 0.0
    %719 = vmatpush1.msra.mxu0 0.0
    %720 = vmatprep.subr.mxu0 0.0
    %721 = vmatpush1.msra.mxu0 0.0
    %722 = vmatprep.subr.mxu0 0.0
    %723 = vmatpush1.msra.mxu0 0.0
    %724 = vmatprep.subr.mxu0 0.0
    %725 = vmatpush1.msra.mxu0 0.0
    %726 = vmatprep.subr.mxu0 0.0
    %727 = vmatpush1.msra.mxu0 0.0
    %728 = vmatprep.subr.mxu0 0.0
    %729 = vmatpush1.msra.mxu0 %v62
    %730 = vmatprep.subr.mxu0 0.0
    %731 = vmatpush1.msra.mxu0 %v61
    %732 = vmatprep.subr.mxu0 0.0
    %733 = vmatpush1.msra.mxu0 %v60
    %734 = vmatprep.subr.mxu0 0.0
    %735 = vmatpush1.msra.mxu0 %v59
    %736 = vmatprep.subr.mxu0 0.0
    %737 = vmatpush2.msra.mxu0 0.0
    %738 = vmatprep.subr.mxu0 0.0
    %739 = vmatpush2.msra.mxu0 0.0
    %740 = vmatprep.subr.mxu0 0.0
    %741 = vmatpush2.msra.mxu0 0.0
    %742 = vmatprep.subr.mxu0 0.0
    %743 = vmatpush2.msra.mxu0 0.0
    %744 = vmatprep.subr.mxu0 0.0
    %745 = vmatpush2.msra.mxu0 0.0
    %746 = vmatprep.subr.mxu0 0.0
    %747 = vmatpush2.msra.mxu0 0.0
    %748 = vmatprep.subr.mxu0 0.0
    %749 = vmatpush2.msra.mxu0 0.0
    %750 = vmatprep.subr.mxu0 0.0
    %751 = vmatpush2.msra.mxu0 0.0
    %752 = vmatprep.subr.mxu0 0.0
    %753 = vmatpush2.msra.mxu0 0.0
    %754 = vmatprep.subr.mxu0 0.0
    %755 = vmatpush2.msra.mxu0 0.0
    %756 = vmatprep.subr.mxu0 0.0
    %757 = vmatpush2.msra.mxu0 0.0
    %758 = vmatprep.subr.mxu0 0.0
    %759 = vmatpush2.msra.mxu0 0.0
    %760 = vmatprep.subr.mxu0 0.0
    %761 = vmatpush2.msra.mxu0 0.0
    %762 = vmatprep.subr.mxu0 0.0
    %763 = vmatpush2.msra.mxu0 0.0
    %764 = vmatprep.subr.mxu0 0.0
    %765 = vmatpush2.msra.mxu0 0.0
    %766 = vmatprep.subr.mxu0 0.0
    %767 = vmatpush2.msra.mxu0 0.0
    %768 = vmatprep.mubr.f32.mxu0 0.0
    %769 = vmatmul.mubr.f32.gmra.mxu0 %v702
    %v770 = vpop.f32.mrf.mxu0
    %v771 = vadd.f32 0.0, %v770
    %v772 = vpop.f32.mrf.mxu0
    %773 = vdwg.mxu0
    %v774 = vadd.f32 %v701, %v771
    %v775 = vxor.u32 %v774, 2147483648
    %v776 = vmul.f32 %v775, 1.442695
    %v777 = vpow.pop %v776
    %v778 = vadd.f32 %v777, 1.0
    %v779 = vrcp.pop %v778
    %v780 = vmul.f32 1.0, %v779
    %v781 = vtanh.pop %v774
    %v782 = vmul.f32 %v780, %v687
    %784 = vrot.lane.b32.xlu0 %v781, 64
    %v785 = vpop.permute.xlu0 %784
    %v787 = vmul.f32 %v780, %v785
    %789 = vrot.lane.b32.xlu0 %v787, 32
    %v790 = vpop.permute.xlu0 %789
    %v792 = vadd.f32 %v782, %v790
    %v793 = vtanh.pop %v792
    %795 = vrot.lane.b32.xlu0 %v793, 64
    %v796 = vpop.permute.xlu0 %795
    %v798 = vmul.f32 %v780, %v796
    %800 = vrot.lane.b32.xlu0 %v798, 32
    %v801 = vpop.permute.xlu0 %800
    %s803 = scalar_lea.vmem [#allocation7], 12
    %804 = vst.msk [vmem:[%s803] sm:$0x3] %vm173, %v801
    %s805 = scalar_lea.vmem [#allocation2], 14
    %v806 = vld [vmem:[%s805] sm:$0x3]
    %v807 = vsel %vm66, %v801, 0
    %809 = vmatprep.subr.mxu0 0.0
    %810 = vmatpush1.msra.mxu0 0.0
    %811 = vmatprep.subr.mxu0 0.0
    %812 = vmatpush1.msra.mxu0 0.0
    %813 = vmatprep.subr.mxu0 0.0
    %814 = vmatpush1.msra.mxu0 0.0
    %815 = vmatprep.subr.mxu0 0.0
    %816 = vmatpush1.msra.mxu0 0.0
    %817 = vmatprep.subr.mxu0 0.0
    %818 = vmatpush1.msra.mxu0 0.0
    %819 = vmatprep.subr.mxu0 0.0
    %820 = vmatpush1.msra.mxu0 0.0
    %821 = vmatprep.subr.mxu0 0.0
    %822 = vmatpush1.msra.mxu0 0.0
    %823 = vmatprep.subr.mxu0 0.0
    %824 = vmatpush1.msra.mxu0 0.0
    %825 = vmatprep.subr.mxu0 0.0
    %826 = vmatpush1.msra.mxu0 0.0
    %827 = vmatprep.subr.mxu0 0.0
    %828 = vmatpush1.msra.mxu0 0.0
    %829 = vmatprep.subr.mxu0 0.0
    %830 = vmatpush1.msra.mxu0 0.0
    %831 = vmatprep.subr.mxu0 0.0
    %832 = vmatpush1.msra.mxu0 0.0
    %833 = vmatprep.subr.mxu0 0.0
    %834 = vmatpush1.msra.mxu0 %v62
    %835 = vmatprep.subr.mxu0 0.0
    %836 = vmatpush1.msra.mxu0 %v61
    %837 = vmatprep.subr.mxu0 0.0
    %838 = vmatpush1.msra.mxu0 %v60
    %839 = vmatprep.subr.mxu0 0.0
    %840 = vmatpush1.msra.mxu0 %v59
    %841 = vmatprep.subr.mxu0 0.0
    %842 = vmatpush2.msra.mxu0 0.0
    %843 = vmatprep.subr.mxu0 0.0
    %844 = vmatpush2.msra.mxu0 0.0
    %845 = vmatprep.subr.mxu0 0.0
    %846 = vmatpush2.msra.mxu0 0.0
    %847 = vmatprep.subr.mxu0 0.0
    %848 = vmatpush2.msra.mxu0 0.0
    %849 = vmatprep.subr.mxu0 0.0
    %850 = vmatpush2.msra.mxu0 0.0
    %851 = vmatprep.subr.mxu0 0.0
    %852 = vmatpush2.msra.mxu0 0.0
    %853 = vmatprep.subr.mxu0 0.0
    %854 = vmatpush2.msra.mxu0 0.0
    %855 = vmatprep.subr.mxu0 0.0
    %856 = vmatpush2.msra.mxu0 0.0
    %857 = vmatprep.subr.mxu0 0.0
    %858 = vmatpush2.msra.mxu0 0.0
    %859 = vmatprep.subr.mxu0 0.0
    %860 = vmatpush2.msra.mxu0 0.0
    %861 = vmatprep.subr.mxu0 0.0
    %862 = vmatpush2.msra.mxu0 0.0
    %863 = vmatprep.subr.mxu0 0.0
    %864 = vmatpush2.msra.mxu0 0.0
    %865 = vmatprep.subr.mxu0 0.0
    %866 = vmatpush2.msra.mxu0 0.0
    %867 = vmatprep.subr.mxu0 0.0
    %868 = vmatpush2.msra.mxu0 0.0
    %869 = vmatprep.subr.mxu0 0.0
    %870 = vmatpush2.msra.mxu0 0.0
    %871 = vmatprep.subr.mxu0 0.0
    %872 = vmatpush2.msra.mxu0 0.0
    %873 = vmatprep.mubr.f32.mxu0 0.0
    %874 = vmatmul.mubr.f32.gmra.mxu0 %v807
    %v875 = vpop.f32.mrf.mxu0
    %v876 = vadd.f32 0.0, %v875
    %v877 = vpop.f32.mrf.mxu0
    %878 = vdwg.mxu0
    %v879 = vadd.f32 %v806, %v876
    %v880 = vxor.u32 %v879, 2147483648
    %v881 = vmul.f32 %v880, 1.442695
    %v882 = vpow.pop %v881
    %v883 = vadd.f32 %v882, 1.0
    %v884 = vrcp.pop %v883
    %v885 = vmul.f32 1.0, %v884
    %v886 = vtanh.pop %v879
    %v887 = vmul.f32 %v885, %v792
    %889 = vrot.lane.b32.xlu0 %v886, 64
    %v890 = vpop.permute.xlu0 %889
    %v892 = vmul.f32 %v885, %v890
    %894 = vrot.lane.b32.xlu0 %v892, 32
    %v895 = vpop.permute.xlu0 %894
    %v897 = vadd.f32 %v887, %v895
    %v898 = vtanh.pop %v897
    %900 = vrot.lane.b32.xlu0 %v898, 64
    %v901 = vpop.permute.xlu0 %900
    %v903 = vmul.f32 %v885, %v901
    %905 = vrot.lane.b32.xlu0 %v903, 32
    %v906 = vpop.permute.xlu0 %905
    %s908 = scalar_lea.vmem [#allocation7], 14
    %909 = vst.msk [vmem:[%s908] sm:$0x3] %vm173, %v906
    %910 = vst.msk [vmem:[#allocation8] sm:$0x3] %vm173, %v906
    %912 = vrot.lane.b32.xlu0 %v897, 96
    %v913 = vpop.permute.xlu0 %912
    %915 = vst.msk [vmem:[#allocation10] sm:$0x3] %vm173, %v913
    // Predicated region
    $region30: #{tpu_custom_call.1} parent=1 // pred_check
      _
    $region31: #{tpu_custom_call.1} parent=1 // pred_check_branch
      %917 = sbr.rel (0) target = $region33
    $region32: #{tpu_custom_call.1} parent=1 // pred_region
      %s919 = ssub.s32 256, 256
      %920 = vsyncadd [#allocation4], %s919
      %s921 = sshll.u32 [#allocation7], 4
      %s922 = int_to_ptr.vmem [resolvable:$true] %s921
      %927 = dma.vmem_to_hbm [thread:$0]  %s922, 256, %s4, [#allocation4], 32, 32, 2
    $region33: #{tpu_custom_call.1} parent=1 // pred_fallthru
      _
    // Predicated region
    $region34: #{tpu_custom_call.1} parent=1 // pred_check
      _
    $region35: #{tpu_custom_call.1} parent=1 // pred_check_branch
      %929 = sbr.rel (0) target = $region37
    $region36: #{tpu_custom_call.1} parent=1 // pred_region
      %s931 = ssub.s32 32, 32
      %932 = vsyncadd [#allocation9], %s931
      %s934 = sshll.u32 [#allocation8], 4
      %s935 = int_to_ptr.vmem [resolvable:$true] %s934
      %937 = dma.vmem_to_hbm [thread:$0]  %s935, 32, %s5, [#allocation9]
    $region37: #{tpu_custom_call.1} parent=1 // pred_fallthru
      _
    // Predicated region
    $region38: #{tpu_custom_call.1} parent=1 // pred_check
      _
    $region39: #{tpu_custom_call.1} parent=1 // pred_check_branch
      %939 = sbr.rel (0) target = $region41
    $region40: #{tpu_custom_call.1} parent=1 // pred_region
      %s941 = ssub.s32 32, 32
      %942 = vsyncadd [#allocation9], %s941
      %s944 = sshll.u32 [#allocation10], 4
      %s945 = int_to_ptr.vmem [resolvable:$true] %s944
      %947 = dma.vmem_to_hbm [thread:$0]  %s945, 32, %s6, [#allocation9]
    $region41: #{tpu_custom_call.1} parent=1 // pred_fallthru
      _
    // Predicated region
    $region42: #{tpu_custom_call.1} parent=1 // pred_check
      _
    $region43: #{tpu_custom_call.1} parent=1 // pred_check_branch
      %949 = sbr.rel (0) target = $region45
    $region44: #{tpu_custom_call.1} parent=1 // pred_region
      %950 = dma.done [#allocation4], 256
    $region45: #{tpu_custom_call.1} parent=1 // pred_fallthru
      _
    // Predicated region
    $region46: #{tpu_custom_call.1} parent=1 // pred_check
      _
    $region47: #{tpu_custom_call.1} parent=1 // pred_check_branch
      %952 = sbr.rel (0) target = $region49
    $region48: #{tpu_custom_call.1} parent=1 // pred_region
      %953 = dma.done [#allocation9], 32
    $region49: #{tpu_custom_call.1} parent=1 // pred_fallthru
      _
    // Predicated region
    $region50: #{tpu_custom_call.1} parent=1 // pred_check
      _
    $region51: #{tpu_custom_call.1} parent=1 // pred_check_branch
      %955 = sbr.rel (0) target = $region53
    $region52: #{tpu_custom_call.1} parent=1 // pred_region
      %956 = dma.done [#allocation9], 32
    $region53: #{tpu_custom_call.1} parent=1 // pred_fallthru
      _
    %957 = vsyncpa [#allocation3], 1
    %958 = vsyncpa [#allocation6], 1
    %959 = vsyncpa [#allocation4], 1
    %960 = vsyncpa [#allocation9], 1

</llo_original>
